<compile_context>
chip_gen: v6e
topology: v6e:2x2x1
jax: 0.10.0
libtpu: 0.0.40
codegen_flags: <defaults>
</compile_context>

<pallas_src>
import functools

import jax
import jax.numpy as jnp
from jax.experimental import pallas as pl
from jax.experimental.pallas import tpu as pltpu

LANES = 128


def _round_up(x, m):
    return ((x + m - 1) // m) * m


# --------------------------------------------------------------------------------------
# Energy head: y[mol] = sum_{atoms in mol} silu(x @ W1) @ W2   (W2 applied after pooling,
# exact since W2 is linear).  Grid: 1-D over atom tiles ("arbitrary" reduction axis);
# the per-molecule pooled accumulator stays resident in VMEM scratch.
# --------------------------------------------------------------------------------------
def _energy_head_kernel(batch_ref, x_ref, w1_ref, w2row_ref, energy_ref, pooled_acc):
    i = pl.program_id(0)

    @pl.when(i == 0)
    def _():
        pooled_acc[...] = jnp.zeros_like(pooled_acc)

    # lane-dense MXU matmul: bf16 operands, f32 accumulation
    h = jnp.dot(x_ref[...], w1_ref[...], preferred_element_type=jnp.float32)
    h = jax.nn.silu(h)  # f32 element-wise (VPU + EUP)

    # scatter-sum over molecules: one-hot built in-kernel from int indices (no HBM one-hot)
    n_mol_pad = pooled_acc.shape[0]
    tile_a = x_ref.shape[0]
    mol_ids = jax.lax.broadcasted_iota(jnp.int32, (n_mol_pad, tile_a), 0)
    mask = (mol_ids == batch_ref[...]).astype(jnp.float32)          # [n_mol_pad, tile_a]
    pooled_acc[...] += jnp.dot(mask, h, preferred_element_type=jnp.float32)

    @pl.when(i == pl.num_programs(0) - 1)
    def _():
        # final Linear(emb -> 1, bias=False) as VPU mul + lane reduction (single tiny store)
        energy_ref[...] = jnp.sum(
            pooled_acc[...] * w2row_ref[...], axis=-1, keepdims=True
        )


# --------------------------------------------------------------------------------------
# Forces head, stage 1 (per-edge MLP): f_edge = (MLP(edge_emb)) * V_st, computed ONCE per
# edge and stored as a lane-dense bf16 slab [ne_pad, 128].  Grid: 1-D over edge tiles,
# fully "parallel" (usable by v7x's 2 TensorCores).
# --------------------------------------------------------------------------------------
def _forces_mlp_kernel(edge_ref, w1_ref, b1_ref, w2row_ref, b2_ref, vst_ref, fedge_ref):
    # out_forces MLP: bf16 MXU matmul, f32 element-wise
    hf = jnp.dot(edge_ref[...], w1_ref[...], preferred_element_type=jnp.float32)
    hf = jax.nn.silu(hf + b1_ref[...])
    # Linear(emb -> 1) + bias as VPU mul + lane reduce; scalar bias from SMEM
    f_scalar = jnp.sum(hf * w2row_ref[...], axis=-1, keepdims=True) + b2_ref[0, 0]
    # per-edge scalar * lane-padded V_st -> lane-dense bf16 store
    fedge_ref[...] = (f_scalar * vst_ref[...]).astype(fedge_ref.dtype)


# --------------------------------------------------------------------------------------
# Forces head, stage 2 (scatter): force[atom] = sum_{edges with idx_t==atom} f_edge.
# Grid: (atom tiles -> "parallel", edge tiles -> "arbitrary" reduction).
# TODO(synk): for production graph sizes, sort edges by idx_t and feed per-atom-tile CSR
# offsets via PrefetchScalarGridSpec so each atom tile only visits its own edge range
# (removes the O(tile_a*tile_e) mask and the all-edges sweep per atom tile).
# --------------------------------------------------------------------------------------
def _forces_scatter_kernel(idx_ref, fedge_ref, forces_ref, acc):
    a = pl.program_id(0)   # atom tile (parallel)
    e = pl.program_id(1)   # edge tile (reduction)

    @pl.when(e == 0)
    def _():
        acc[...] = jnp.zeros_like(acc)

    # scatter-sum over idx_t: per-tile one-hot built from indices (bf16 is exact for 0/1)
    tile_a = acc.shape[0]
    tile_e = fedge_ref.shape[0]
    atom_ids = a * tile_a + jax.lax.broadcasted_iota(jnp.int32, (tile_a, tile_e), 0)
    mask = (atom_ids == idx_ref[...]).astype(jnp.bfloat16)            # [tile_a, tile_e]
    acc[...] += jnp.dot(mask, fedge_ref[...], preferred_element_type=jnp.float32)

    @pl.when(e == pl.num_programs(1) - 1)
    def _():
        forces_ref[...] = acc[...]                                     # lane-dense slab


def energy_forces_forward(node_emb, edge_emb, v_st, idx_t, batch, params, *,
                          n_molecules, tile_atoms=128, tile_edges=128):
    """Pallas implementation of the output-head portion of EnergyForcesModelBase.forward."""
    n_atoms, emb_a = node_emb.shape
    n_edges, emb_e = edge_emb.shape

    na_pad = _round_up(n_atoms, tile_atoms)
    ne_pad = _round_up(n_edges, tile_edges)
    nm_pad = _round_up(max(n_molecules, 8), 8)

    # ---- O(n) layout glue (no dense one-hot matrices) ----
    x_nodes = (jnp.zeros((na_pad, emb_a), jnp.float32)
               .at[:n_atoms].set(node_emb)).astype(jnp.bfloat16)
    x_edges = (jnp.zeros((ne_pad, emb_e), jnp.float32)
               .at[:n_edges].set(edge_emb)).astype(jnp.bfloat16)
    batch_row = (jnp.full((1, na_pad), nm_pad, jnp.int32)
                 .at[0, :n_atoms].set(batch.astype(jnp.int32)))
    idx_row = (jnp.full((1, ne_pad), na_pad, jnp.int32)
               .at[0, :n_edges].set(idx_t.astype(jnp.int32)))
    v_st_pad = jnp.zeros((ne_pad, LANES), jnp.float32).at[:n_edges, :3].set(v_st)

    e_w1 = params["e_w1"].astype(jnp.bfloat16)
    f_w1 = params["f_w1"].astype(jnp.bfloat16)
    e_w2_row = params["e_w2"].reshape(1, emb_a).astype(jnp.float32)
    f_w2_row = params["f_w2"].reshape(1, emb_e).astype(jnp.float32)
    f_b1 = params["f_b1"].reshape(1, emb_e).astype(jnp.float32)
    f_b2 = params["f_b2"].reshape(1, 1).astype(jnp.float32)

    vmem_limit = 32 * 1024 * 1024  # conservative: fits scoped VMEM on v5e/v6e/v7x

    # ---------------- energy head ----------------
    energy = pl.pallas_call(
        _energy_head_kernel,
        out_shape=jax.ShapeDtypeStruct((nm_pad, 1), jnp.float32),
        grid=(na_pad // tile_atoms,),
        in_specs=[
            pl.BlockSpec((1, tile_atoms), lambda i: (0, i)),      # batch indices (int32)
            pl.BlockSpec((tile_atoms, emb_a), lambda i: (i, 0)),  # node embeddings (bf16)
            pl.BlockSpec((emb_a, emb_a), lambda i: (0, 0)),       # e_w1 (bf16)
            pl.BlockSpec((1, emb_a), lambda i: (0, 0)),           # e_w2 row (f32)
        ],
        out_specs=pl.BlockSpec((nm_pad, 1), lambda i: (0, 0)),
        scratch_shapes=[pltpu.VMEM((nm_pad, emb_a), jnp.float32)],
        compiler_params=pltpu.CompilerParams(
            dimension_semantics=("arbitrary",),
            vmem_limit_bytes=vmem_limit,
        ),
    )(batch_row, x_nodes, e_w1, e_w2_row)

    # ---------------- forces head: per-edge MLP (one pass over edges) ----------------
    f_edge = pl.pallas_call(
        _forces_mlp_kernel,
        out_shape=jax.ShapeDtypeStruct((ne_pad, LANES), jnp.bfloat16),
        grid=(ne_pad // tile_edges,),
        in_specs=[
            pl.BlockSpec((tile_edges, emb_e), lambda e: (e, 0)),   # edge embeddings (bf16)
            pl.BlockSpec((emb_e, emb_e), lambda e: (0, 0)),        # f_w1 (bf16)
            pl.BlockSpec((1, emb_e), lambda e: (0, 0)),            # f_b1 (f32)
            pl.BlockSpec((1, emb_e), lambda e: (0, 0)),            # f_w2 row (f32)
            pl.BlockSpec(memory_space=pltpu.MemorySpace.SMEM),     # f_b2 scalar
            pl.BlockSpec((tile_edges, LANES), lambda e: (e, 0)),   # V_st lane-padded (f32)
        ],
        out_specs=pl.BlockSpec((tile_edges, LANES), lambda e: (e, 0)),
        compiler_params=pltpu.CompilerParams(
            dimension_semantics=("parallel",),
            vmem_limit_bytes=vmem_limit,
        ),
    )(x_edges, f_w1, f_b1, f_w2_row, f_b2, v_st_pad)

    # ---------------- forces head: scatter-sum over idx_t ----------------
    forces_pad = pl.pallas_call(
        _forces_scatter_kernel,
        out_shape=jax.ShapeDtypeStruct((na_pad, LANES), jnp.float32),
        grid=(na_pad // tile_atoms, ne_pad // tile_edges),
        in_specs=[
            pl.BlockSpec((1, tile_edges), lambda a, e: (0, e)),       # idx_t (int32)
            pl.BlockSpec((tile_edges, LANES), lambda a, e: (e, 0)),   # f_edge slab (bf16)
        ],
        out_specs=pl.BlockSpec((tile_atoms, LANES), lambda a, e: (a, 0)),
        scratch_shapes=[pltpu.VMEM((tile_atoms, LANES), jnp.float32)],
        compiler_params=pltpu.CompilerParams(
            dimension_semantics=("parallel", "arbitrary"),
            vmem_limit_bytes=vmem_limit,
        ),
    )(idx_row, f_edge)

    preds = {
        "y": energy[:n_molecules, 0],       # rearrange(output, 'b 1 -> b')
        "force": forces_pad[:n_atoms, :3],  # [n_atoms, 3]
    }
    return preds


if __name__ == "__main__":
    key = jax.random.PRNGKey(0)

    n_atoms, n_edges, n_molecules = 256, 512, 2
    emb_size_atom = emb_size_edge = 128
    num_targets = 1
    num_elements = 100

    ks = jax.random.split(key, 12)

    # ----- synthetic graph data (BaseData fields) -----
    atomic_numbers = jax.random.randint(ks[0], (n_atoms,), 1, num_elements + 1)
    batch = jnp.concatenate(
        [jnp.zeros(n_atoms // 2, jnp.int32), jnp.ones(n_atoms - n_atoms // 2, jnp.int32)]
    )
    idx_t = jax.random.randint(ks[1], (n_edges,), 0, n_atoms)
    idx_s = jax.random.randint(ks[2], (n_edges,), 0, n_atoms)
    pos = jax.random.normal(ks[3], (n_atoms, 3), jnp.float32)

    # ----- embedding: h = self.embedding(atomic_numbers - 1)  (plain-JAX glue) -----
    emb_table = 0.1 * jax.random.normal(ks[4], (num_elements, emb_size_atom), jnp.float32)
    h = emb_table[atomic_numbers - 1]

    # TODO(synk): self.backbone(data, h=h) is an abstract external GOC backbone; its
    # outputs ('energy' per-atom embeddings, 'forces' per-edge embeddings, 'V_st',
    # 'idx_t') are synthesized deterministically here instead.
    node_emb = h
    edge_emb = 0.1 * jax.random.normal(ks[5], (n_edges, emb_size_edge), jnp.float32)
    v_raw = pos[idx_t] - pos[idx_s]
    v_st = v_raw / (jnp.linalg.norm(v_raw, axis=-1, keepdims=True) + 1e-6)

    # ----- output-head parameters (dims = [emb]*num_mlps + [num_targets], num_mlps=2) -----
    def init(k, shape, fan_in):
        return jax.random.normal(k, shape, jnp.float32) / jnp.sqrt(float(fan_in))

    params = {
        # out_energy: Linear(emb, emb, bias=False) + act, Linear(emb, 1, bias=False)
        "e_w1": init(ks[6], (emb_size_atom, emb_size_atom), emb_size_atom),
        "e_w2": init(ks[7], (emb_size_atom, num_targets), emb_size_atom),
        # out_forces: Linear(emb, emb) + act, Linear(emb, 1)  (bias=True)
        "f_w1": init(ks[8], (emb_size_edge, emb_size_edge), emb_size_edge),
        "f_b1": 0.1 * jax.random.normal(ks[10], (1, emb_size_edge), jnp.float32),
        "f_w2": init(ks[9], (emb_size_edge, num_targets), emb_size_edge),
        "f_b2": 0.1 * jax.random.normal(ks[11], (1, num_targets), jnp.float32),
    }

    fwd = jax.jit(functools.partial(energy_forces_forward, n_molecules=n_molecules))
    preds = fwd(node_emb, edge_emb, v_st, idx_t, batch, params)
    jax.block_until_ready(preds)

    assert preds["y"].shape == (n_molecules,), preds["y"].shape
    assert preds["force"].shape == (n_atoms, 3), preds["force"].shape

    # ----- pure-JAX f32 reference (kernel uses bf16 MXU operands -> loose tolerance) -----
    def reference(node_emb, edge_emb, v_st, idx_t, batch, params):
        h1 = jax.nn.silu(node_emb @ params["e_w1"])
        e_atom = h1 @ params["e_w2"]
        y = jax.ops.segment_sum(e_atom[:, 0], batch, num_segments=n_molecules)
        h2 = jax.nn.silu(edge_emb @ params["f_w1"] + params["f_b1"])
        f_scalar = h2 @ params["f_w2"] + params["f_b2"]
        force = jax.ops.segment_sum(f_scalar * v_st, idx_t, num_segments=n_atoms)
        return y, force

    y_ref, f_ref = reference(node_emb, edge_emb, v_st, idx_t, batch, params)
    assert jnp.allclose(preds["y"], y_ref, rtol=5e-2, atol=5e-2), (preds["y"], y_ref)
    assert jnp.allclose(preds["force"], f_ref, rtol=5e-2, atol=5e-2)

    print("KERNEL_OK")
</pallas_src>

<mosaic_0001>
module attributes {stable_mosaic.version = 11 : i64} {
  func.func @_forces_mlp_kernel(%arg0: i32, %arg1: memref<128x128xbf16, #tpu.memory_space<vmem>>, %arg2: memref<128x128xbf16, #tpu.memory_space<vmem>>, %arg3: memref<1x128xf32, #tpu.memory_space<vmem>>, %arg4: memref<1x128xf32, #tpu.memory_space<vmem>>, %arg5: memref<1x1xf32, #tpu.memory_space<smem>>, %arg6: memref<128x128xf32, #tpu.memory_space<vmem>>, %arg7: memref<128x128xbf16, #tpu.memory_space<vmem>>) attributes {dimension_semantics = [#tpu.dimension_semantics<parallel>], iteration_bounds = array<i64: 4>, scalar_prefetch = 0 : i64, scratch_operands = 0 : i64, tpu.core_type = #tpu.core_type<tc>, window_params = [{transform_indices = @transform_0, window_bounds = array<i64: 128, 128>}, {pipeline_mode = #tpu.pipeline_mode<synchronous>, transform_indices = @transform_1, window_bounds = array<i64: 128, 128>}, {pipeline_mode = #tpu.pipeline_mode<synchronous>, transform_indices = @transform_2, window_bounds = array<i64: 1, 128>}, {pipeline_mode = #tpu.pipeline_mode<synchronous>, transform_indices = @transform_3, window_bounds = array<i64: 1, 128>}, {transform_indices = @transform_4, window_bounds = array<i64: 1, 1>}, {transform_indices = @transform_5, window_bounds = array<i64: 128, 128>}, {transform_indices = @transform_6, window_bounds = array<i64: 128, 128>}]} {
    %c0 = arith.constant 0 : index
    %c0_0 = arith.constant 0 : index
    %0 = vector.load %arg1[%c0, %c0_0] : memref<128x128xbf16, #tpu.memory_space<vmem>>, vector<128x128xbf16>
    %c0_1 = arith.constant 0 : index
    %c0_2 = arith.constant 0 : index
    %1 = vector.load %arg2[%c0_1, %c0_2] : memref<128x128xbf16, #tpu.memory_space<vmem>>, vector<128x128xbf16>
    %cst = arith.constant dense<0.000000e+00> : vector<128x128xf32>
    %2 = tpu.matmul %0, %1, %cst {dimension_numbers = #tpu.dot_dimension_numbers<[1], [0], [0], [1], [0, 0, 1, 1], [], []>} : vector<128x128xbf16>, vector<128x128xbf16>, vector<128x128xf32> -> vector<128x128xf32>
    %c0_3 = arith.constant 0 : index
    %c0_4 = arith.constant 0 : index
    %3 = vector.load %arg3[%c0_3, %c0_4] : memref<1x128xf32, #tpu.memory_space<vmem>>, vector<1x128xf32>
    %4 = vector.broadcast %3 : vector<1x128xf32> to vector<128x128xf32>
    %5 = arith.addf %2, %4 : vector<128x128xf32>
    %6 = arith.negf %5 : vector<128x128xf32>
    %7 = math.exp %6 : vector<128x128xf32>
    %cst_5 = arith.constant 1.000000e+00 : f32
    %8 = vector.broadcast %cst_5 : f32 to vector<128x128xf32>
    %9 = arith.addf %8, %7 : vector<128x128xf32>
    %10 = arith.divf %8, %9 : vector<128x128xf32>
    %11 = arith.mulf %5, %10 : vector<128x128xf32>
    %c0_6 = arith.constant 0 : index
    %c0_7 = arith.constant 0 : index
    %12 = vector.load %arg4[%c0_6, %c0_7] : memref<1x128xf32, #tpu.memory_space<vmem>>, vector<1x128xf32>
    %13 = vector.broadcast %12 : vector<1x128xf32> to vector<128x128xf32>
    %14 = arith.mulf %11, %13 : vector<128x128xf32>
    %cst_8 = arith.constant dense<0.000000e+00> : vector<128xf32>
    %15 = vector.multi_reduction <add>, %14, %cst_8 [1] : vector<128x128xf32> to vector<128xf32>
    %16 = vector.shape_cast %15 : vector<128xf32> to vector<128x1xf32>
    %c0_9 = arith.constant 0 : index
    %c0_10 = arith.constant 0 : index
    %17 = memref.load %arg5[%c0_9, %c0_10] : memref<1x1xf32, #tpu.memory_space<smem>>
    %18 = vector.broadcast %17 : f32 to vector<128x1xf32>
    %19 = arith.addf %16, %18 : vector<128x1xf32>
    %c0_11 = arith.constant 0 : index
    %c0_12 = arith.constant 0 : index
    %20 = vector.load %arg6[%c0_11, %c0_12] : memref<128x128xf32, #tpu.memory_space<vmem>>, vector<128x128xf32>
    %21 = vector.broadcast %19 : vector<128x1xf32> to vector<128x128xf32>
    %22 = arith.mulf %21, %20 : vector<128x128xf32>
    %23 = arith.truncf %22 : vector<128x128xf32> to vector<128x128xbf16>
    %c0_13 = arith.constant 0 : index
    %c0_14 = arith.constant 0 : index
    %24 = vector.load %arg7[%c0_13, %c0_14] : memref<128x128xbf16, #tpu.memory_space<vmem>>, vector<128x128xbf16>
    tpu.vector_store %arg7[%c0_13, %c0_14], %23 {strides = array<i32>} : memref<128x128xbf16, #tpu.memory_space<vmem>>, vector<128x128xbf16>,
    return
  }
  func.func @transform_0(%arg0: i32) -> (i32, i32) {
    %c0_i32 = arith.constant 0 : i32
    %c0_i32_0 = arith.constant 0 : i32
    return %arg0, %c0_i32 : i32, i32
  }
  func.func @transform_1(%arg0: i32) -> (i32, i32) {
    %c0_i32 = arith.constant 0 : i32
    %c0_i32_0 = arith.constant 0 : i32
    %c0_i32_1 = arith.constant 0 : i32
    return %c0_i32, %c0_i32_0 : i32, i32
  }
  func.func @transform_2(%arg0: i32) -> (i32, i32) {
    %c0_i32 = arith.constant 0 : i32
    %c0_i32_0 = arith.constant 0 : i32
    %c0_i32_1 = arith.constant 0 : i32
    return %c0_i32, %c0_i32_0 : i32, i32
  }
  func.func @transform_3(%arg0: i32) -> (i32, i32) {
    %c0_i32 = arith.constant 0 : i32
    %c0_i32_0 = arith.constant 0 : i32
    %c0_i32_1 = arith.constant 0 : i32
    return %c0_i32, %c0_i32_0 : i32, i32
  }
  func.func @transform_4(%arg0: i32) -> (i32, i32) {
    %c0_i32 = arith.constant 0 : i32
    %c0_i32_0 = arith.constant 0 : i32
    %c0_i32_1 = arith.constant 0 : i32
    return %c0_i32, %c0_i32_0 : i32, i32
  }
  func.func @transform_5(%arg0: i32) -> (i32, i32) {
    %c0_i32 = arith.constant 0 : i32
    %c0_i32_0 = arith.constant 0 : i32
    return %arg0, %c0_i32 : i32, i32
  }
  func.func @transform_6(%arg0: i32) -> (i32, i32) {
    %c0_i32 = arith.constant 0 : i32
    %c0_i32_0 = arith.constant 0 : i32
    return %arg0, %c0_i32 : i32, i32
  }
}

module attributes {stable_mosaic.version = 11 : i64} {
  func.func @_forces_scatter_kernel(%arg0: i32, %arg1: i32, %arg2: memref<1x128xi32, #tpu.memory_space<vmem>>, %arg3: memref<128x128xbf16, #tpu.memory_space<vmem>>, %arg4: memref<128x128xf32, #tpu.memory_space<vmem>>, %arg5: memref<128x128xf32, #tpu.memory_space<vmem>>) attributes {dimension_semantics = [#tpu.dimension_semantics<parallel>, #tpu.dimension_semantics<arbitrary>], iteration_bounds = array<i64: 2, 4>, scalar_prefetch = 0 : i64, scratch_operands = 1 : i64, tpu.core_type = #tpu.core_type<tc>, window_params = [{transform_indices = @transform_0, window_bounds = array<i64: 1, 128>}, {transform_indices = @transform_1, window_bounds = array<i64: 128, 128>}, {transform_indices = @transform_2, window_bounds = array<i64: 128, 128>}]} {
    %c0_i32 = arith.constant 0 : i32
    %0 = arith.cmpi eq, %arg1, %c0_i32 : i32
    %1 = arith.extui %0 : i1 to i32
    %c0_i32_0 = arith.constant 0 : i32
    %2 = arith.cmpi ne, %1, %c0_i32_0 : i32
    scf.if %2 {
      %cst_9 = arith.constant 0.000000e+00 : f32
      %21 = vector.broadcast %cst_9 : f32 to vector<128x128xf32>
      %c0_10 = arith.constant 0 : index
      %c0_11 = arith.constant 0 : index
      %22 = vector.load %arg5[%c0_10, %c0_11] : memref<128x128xf32, #tpu.memory_space<vmem>>, vector<128x128xf32>
      tpu.vector_store %arg5[%c0_10, %c0_11], %21 {strides = array<i32>} : memref<128x128xf32, #tpu.memory_space<vmem>>, vector<128x128xf32>,
    } else {
    }
    %c128_i32 = arith.constant 128 : i32
    %3 = arith.muli %arg0, %c128_i32 : i32
    %4 = tpu.iota {dimensions = array<i32: 0>} : vector<128x128xi32>
    %5 = vector.broadcast %3 : i32 to vector<128x128xi32>
    %6 = arith.addi %5, %4 : vector<128x128xi32>
    %c0 = arith.constant 0 : index
    %c0_1 = arith.constant 0 : index
    %7 = vector.load %arg2[%c0, %c0_1] : memref<1x128xi32, #tpu.memory_space<vmem>>, vector<1x128xi32>
    %8 = vector.broadcast %7 : vector<1x128xi32> to vector<128x128xi32>
    %9 = arith.cmpi eq, %6, %8 : vector<128x128xi32>
    %10 = arith.extui %9 : vector<128x128xi1> to vector<128x128xi32>
    %11 = arith.sitofp %10 : vector<128x128xi32> to vector<128x128xf32>
    %12 = arith.truncf %11 : vector<128x128xf32> to vector<128x128xbf16>
    %c0_2 = arith.constant 0 : index
    %c0_3 = arith.constant 0 : index
    %13 = vector.load %arg5[%c0_2, %c0_3] : memref<128x128xf32, #tpu.memory_space<vmem>>, vector<128x128xf32>
    %c0_4 = arith.constant 0 : index
    %c0_5 = arith.constant 0 : index
    %14 = vector.load %arg3[%c0_4, %c0_5] : memref<128x128xbf16, #tpu.memory_space<vmem>>, vector<128x128xbf16>
    %cst = arith.constant dense<0.000000e+00> : vector<128x128xf32>
    %15 = tpu.matmul %12, %14, %cst {dimension_numbers = #tpu.dot_dimension_numbers<[1], [0], [0], [1], [0, 0, 1, 1], [], []>} : vector<128x128xbf16>, vector<128x128xbf16>, vector<128x128xf32> -> vector<128x128xf32>
    %16 = arith.addf %13, %15 : vector<128x128xf32>
    %c0_6 = arith.constant 0 : index
    %c0_7 = arith.constant 0 : index
    %17 = vector.load %arg5[%c0_6, %c0_7] : memref<128x128xf32, #tpu.memory_space<vmem>>, vector<128x128xf32>
    tpu.vector_store %arg5[%c0_6, %c0_7], %16 {strides = array<i32>} : memref<128x128xf32, #tpu.memory_space<vmem>>, vector<128x128xf32>,
    %c3_i32 = arith.constant 3 : i32
    %18 = arith.cmpi eq, %arg1, %c3_i32 : i32
    %19 = arith.extui %18 : i1 to i32
    %c0_i32_8 = arith.constant 0 : i32
    %20 = arith.cmpi ne, %19, %c0_i32_8 : i32
    scf.if %20 {
      %c0_9 = arith.constant 0 : index
      %c0_10 = arith.constant 0 : index
      %21 = vector.load %arg5[%c0_9, %c0_10] : memref<128x128xf32, #tpu.memory_space<vmem>>, vector<128x128xf32>
      %c0_11 = arith.constant 0 : index
      %c0_12 = arith.constant 0 : index
      %22 = vector.load %arg4[%c0_11, %c0_12] : memref<128x128xf32, #tpu.memory_space<vmem>>, vector<128x128xf32>
      tpu.vector_store %arg4[%c0_11, %c0_12], %21 {strides = array<i32>} : memref<128x128xf32, #tpu.memory_space<vmem>>, vector<128x128xf32>,
    } else {
    }
    return
  }
  func.func @transform_0(%arg0: i32, %arg1: i32) -> (i32, i32) {
    %c0_i32 = arith.constant 0 : i32
    %c0_i32_0 = arith.constant 0 : i32
    return %c0_i32, %arg1 : i32, i32
  }
  func.func @transform_1(%arg0: i32, %arg1: i32) -> (i32, i32) {
    %c0_i32 = arith.constant 0 : i32
    %c0_i32_0 = arith.constant 0 : i32
    return %arg1, %c0_i32 : i32, i32
  }
  func.func @transform_2(%arg0: i32, %arg1: i32) -> (i32, i32) {
    %c0_i32 = arith.constant 0 : i32
    %c0_i32_0 = arith.constant 0 : i32
    return %arg0, %c0_i32 : i32, i32
  }
}

module attributes {stable_mosaic.version = 11 : i64} {
  func.func @_energy_head_kernel(%arg0: i32, %arg1: memref<1x128xi32, #tpu.memory_space<vmem>>, %arg2: memref<128x128xbf16, #tpu.memory_space<vmem>>, %arg3: memref<128x128xbf16, #tpu.memory_space<vmem>>, %arg4: memref<1x128xf32, #tpu.memory_space<vmem>>, %arg5: memref<8x1xf32, #tpu.memory_space<vmem>>, %arg6: memref<8x128xf32, #tpu.memory_space<vmem>>) attributes {dimension_semantics = [#tpu.dimension_semantics<arbitrary>], iteration_bounds = array<i64: 2>, scalar_prefetch = 0 : i64, scratch_operands = 1 : i64, tpu.core_type = #tpu.core_type<tc>, window_params = [{transform_indices = @transform_0, window_bounds = array<i64: 1, 128>}, {transform_indices = @transform_1, window_bounds = array<i64: 128, 128>}, {pipeline_mode = #tpu.pipeline_mode<synchronous>, transform_indices = @transform_2, window_bounds = array<i64: 128, 128>}, {pipeline_mode = #tpu.pipeline_mode<synchronous>, transform_indices = @transform_3, window_bounds = array<i64: 1, 128>}, {pipeline_mode = #tpu.pipeline_mode<synchronous>, transform_indices = @transform_4, window_bounds = array<i64: 8, 1>}]} {
    %c0_i32 = arith.constant 0 : i32
    %0 = arith.cmpi eq, %arg0, %c0_i32 : i32
    %1 = arith.extui %0 : i1 to i32
    %c0_i32_0 = arith.constant 0 : i32
    %2 = arith.cmpi ne, %1, %c0_i32_0 : i32
    scf.if %2 {
      %cst_13 = arith.constant 0.000000e+00 : f32
      %25 = vector.broadcast %cst_13 : f32 to vector<8x128xf32>
      %c0_14 = arith.constant 0 : index
      %c0_15 = arith.constant 0 : index
      %26 = vector.load %arg6[%c0_14, %c0_15] : memref<8x128xf32, #tpu.memory_space<vmem>>, vector<8x128xf32>
      tpu.vector_store %arg6[%c0_14, %c0_15], %25 {strides = array<i32>} : memref<8x128xf32, #tpu.memory_space<vmem>>, vector<8x128xf32>,
    } else {
    }
    %c0 = arith.constant 0 : index
    %c0_1 = arith.constant 0 : index
    %3 = vector.load %arg2[%c0, %c0_1] : memref<128x128xbf16, #tpu.memory_space<vmem>>, vector<128x128xbf16>
    %c0_2 = arith.constant 0 : index
    %c0_3 = arith.constant 0 : index
    %4 = vector.load %arg3[%c0_2, %c0_3] : memref<128x128xbf16, #tpu.memory_space<vmem>>, vector<128x128xbf16>
    %cst = arith.constant dense<0.000000e+00> : vector<128x128xf32>
    %5 = tpu.matmul %3, %4, %cst {dimension_numbers = #tpu.dot_dimension_numbers<[1], [0], [0], [1], [0, 0, 1, 1], [], []>} : vector<128x128xbf16>, vector<128x128xbf16>, vector<128x128xf32> -> vector<128x128xf32>
    %6 = arith.negf %5 : vector<128x128xf32>
    %7 = math.exp %6 : vector<128x128xf32>
    %cst_4 = arith.constant 1.000000e+00 : f32
    %8 = vector.broadcast %cst_4 : f32 to vector<128x128xf32>
    %9 = arith.addf %8, %7 : vector<128x128xf32>
    %10 = arith.divf %8, %9 : vector<128x128xf32>
    %11 = arith.mulf %5, %10 : vector<128x128xf32>
    %12 = tpu.iota {dimensions = array<i32: 0>} : vector<8x128xi32>
    %c0_5 = arith.constant 0 : index
    %c0_6 = arith.constant 0 : index
    %13 = vector.load %arg1[%c0_5, %c0_6] : memref<1x128xi32, #tpu.memory_space<vmem>>, vector<1x128xi32>
    %14 = vector.broadcast %13 : vector<1x128xi32> to vector<8x128xi32>
    %15 = arith.cmpi eq, %12, %14 : vector<8x128xi32>
    %16 = arith.extui %15 : vector<8x128xi1> to vector<8x128xi32>
    %17 = arith.sitofp %16 : vector<8x128xi32> to vector<8x128xf32>
    %c0_7 = arith.constant 0 : index
    %c0_8 = arith.constant 0 : index
    %18 = vector.load %arg6[%c0_7, %c0_8] : memref<8x128xf32, #tpu.memory_space<vmem>>, vector<8x128xf32>
    %cst_9 = arith.constant dense<0.000000e+00> : vector<8x128xf32>
    %19 = tpu.matmul %17, %11, %cst_9 {dimension_numbers = #tpu.dot_dimension_numbers<[1], [0], [0], [1], [0, 0, 1, 1], [], []>} : vector<8x128xf32>, vector<128x128xf32>, vector<8x128xf32> -> vector<8x128xf32>
    %20 = arith.addf %18, %19 : vector<8x128xf32>
    %c0_10 = arith.constant 0 : index
    %c0_11 = arith.constant 0 : index
    %21 = vector.load %arg6[%c0_10, %c0_11] : memref<8x128xf32, #tpu.memory_space<vmem>>, vector<8x128xf32>
    tpu.vector_store %arg6[%c0_10, %c0_11], %20 {strides = array<i32>} : memref<8x128xf32, #tpu.memory_space<vmem>>, vector<8x128xf32>,
    %c1_i32 = arith.constant 1 : i32
    %22 = arith.cmpi eq, %arg0, %c1_i32 : i32
    %23 = arith.extui %22 : i1 to i32
    %c0_i32_12 = arith.constant 0 : i32
    %24 = arith.cmpi ne, %23, %c0_i32_12 : i32
    scf.if %24 {
      %c0_13 = arith.constant 0 : index
      %c0_14 = arith.constant 0 : index
      %25 = vector.load %arg6[%c0_13, %c0_14] : memref<8x128xf32, #tpu.memory_space<vmem>>, vector<8x128xf32>
      %c0_15 = arith.constant 0 : index
      %c0_16 = arith.constant 0 : index
      %26 = vector.load %arg4[%c0_15, %c0_16] : memref<1x128xf32, #tpu.memory_space<vmem>>, vector<1x128xf32>
      %27 = vector.broadcast %26 : vector<1x128xf32> to vector<8x128xf32>
      %28 = arith.mulf %25, %27 : vector<8x128xf32>
      %cst_17 = arith.constant dense<0.000000e+00> : vector<8xf32>
      %29 = vector.multi_reduction <add>, %28, %cst_17 [1] : vector<8x128xf32> to vector<8xf32>
      %30 = vector.shape_cast %29 : vector<8xf32> to vector<8x1xf32>
      %c0_18 = arith.constant 0 : index
      %c0_19 = arith.constant 0 : index
      %31 = vector.load %arg5[%c0_18, %c0_19] : memref<8x1xf32, #tpu.memory_space<vmem>>, vector<8x1xf32>
      tpu.vector_store %arg5[%c0_18, %c0_19], %30 {strides = array<i32>} : memref<8x1xf32, #tpu.memory_space<vmem>>, vector<8x1xf32>,
    } else {
    }
    return
  }
  func.func @transform_0(%arg0: i32) -> (i32, i32) {
    %c0_i32 = arith.constant 0 : i32
    %c0_i32_0 = arith.constant 0 : i32
    return %c0_i32, %arg0 : i32, i32
  }
  func.func @transform_1(%arg0: i32) -> (i32, i32) {
    %c0_i32 = arith.constant 0 : i32
    %c0_i32_0 = arith.constant 0 : i32
    return %arg0, %c0_i32 : i32, i32
  }
  func.func @transform_2(%arg0: i32) -> (i32, i32) {
    %c0_i32 = arith.constant 0 : i32
    %c0_i32_0 = arith.constant 0 : i32
    %c0_i32_1 = arith.constant 0 : i32
    return %c0_i32, %c0_i32_0 : i32, i32
  }
  func.func @transform_3(%arg0: i32) -> (i32, i32) {
    %c0_i32 = arith.constant 0 : i32
    %c0_i32_0 = arith.constant 0 : i32
    %c0_i32_1 = arith.constant 0 : i32
    return %c0_i32, %c0_i32_0 : i32, i32
  }
  func.func @transform_4(%arg0: i32) -> (i32, i32) {
    %c0_i32 = arith.constant 0 : i32
    %c0_i32_0 = arith.constant 0 : i32
    %c0_i32_1 = arith.constant 0 : i32
    return %c0_i32, %c0_i32_0 : i32, i32
  }
}

</mosaic_0001>

<llo_original>
// kernel: energy_forces_forward.5
$region0: #{energy_forces_forward.5}
  #allocation0 [shape = 'u32[]', space=smem, size = 0x4, offset = 0x4, fixed_abs, tag = 'smem constant byte address 0x4 - core index']
  #allocation1 [shape = 'u32[144,128]{1,0:T(1,128)}', space=vmem, size = 0x12000, scoped, tag = 'internal scratch']
  #allocation2 [shape = 'f32[128,128]{1,0:T(8,128)}', space=vmem, size = 0x10000, scoped, tag = 'scratch operand']
  %s0 = inlined_call_operand.vmem [shape: s32[1,512], index: 0, kind: input, shape index: {}]
  %s1 = inlined_call_operand.vmem [shape: bf16[512,128], index: 1, kind: input, shape index: {}]
  %s2 = inlined_call_operand.vmem [shape: f32[256,128], index: 2, kind: output, shape index: {}]
  %s3 = sld [smem:[#allocation0]]
  $region49: #{energy_forces_forward.5} parent=0
    _
  %s5 = ssub.s32 1, %s3
  %s6 = scalar_select 0, %s5, %s3
  loop: start=0, step=1, limit=10
  $region2: #{energy_forces_forward.5} parent=0 // loop_pre_header
    _
  $region3: #{energy_forces_forward.5} parent=0 // loop_header
    %s8 = sphi 0, %s12
    %p9 = scmp.ge.s32.totalorder %s8, 10
    %s15 = sphi 0, %s27
    %s16 = sphi 0, %s23
    %s17 = sphi 0, %s15
    %s18 = sphi 0, %s16
    %s19 = sphi 0, %s17
    %s20 = sphi 0, %s18
    %s30 = sphi 0, %s32
    %s33 = sphi 0, %s30
    %s34 = sphi 0, %s33
    %s50 = sphi 0, %s34
    %s56 = sphi 0, %s58
    %s59 = sphi 0, %s56
    %s60 = sphi 0, %s59
    %s76 = sphi 0, %s60
    %s82 = sphi 0, %s84
    %s85 = sphi 0, %s82
    %s86 = sphi 0, %s85
    %s102 = sphi 0, %s86
  $region4: #{energy_forces_forward.5} parent=0 // loop_header_branch
    %11 = sbr.rel (%p9) target = $region8
  $region5: #{energy_forces_forward.5} parent=0 // loop_body
    %s13 = ssub.s32 %s8, 1
    %s14 = ssub.s32 %s8, 2
    %s21 = sadd.s32 1, %s16
    %p22 = scmp.ge.s32.totalorder %s21, 4
    %s23 = scalar_select %p22, 0, %s21
    %s24 = sadd.s32 1, %s15
    %s25 = scalar_select %p22, %s24, %s15
    %p26 = scmp.ge.s32.totalorder %s25, 2
    %s27 = scalar_select %p26, 0, %s25
    %s28 = ssub.s32 %s16, %s23
    %p29 = scmp.eq.s32.totalorder %s28, 0
    %s31 = sadd.s32 %s30, 1
    %s32 = scalar_select %p29, %s30, %s31
    %p35 = pneg %p29
    %p36 = scmp.eq.s32.totalorder %s8, 7
    %p37 = por %p35, %p36
    %p38 = scmp.ne.s32.totalorder %s30, %s33
    %p39 = scmp.eq.s32.totalorder %s8, 0
    %p40 = por %p38, %p39
    %p41 = scmp.ne.s32.totalorder %s30, %s33
    %p42 = scmp.eq.s32.totalorder %s13, 7
    %p43 = por %p41, %p42
    %p44 = scmp.ne.s32.totalorder %s33, %s34
    %p45 = scmp.eq.s32.totalorder %s13, 0
    %p46 = por %p44, %p45
    %p47 = scmp.ne.s32.totalorder %s33, %s34
    %p48 = scmp.eq.s32.totalorder %s14, 7
    %p49 = por %p47, %p48
    %p51 = scmp.ne.s32.totalorder %s34, %s50
    %p52 = scmp.eq.s32.totalorder %s14, 0
    %p53 = por %p51, %p52
    %s54 = ssub.s32 %s16, %s23
    %p55 = scmp.eq.s32.totalorder %s54, 0
    %s57 = sadd.s32 %s56, 1
    %s58 = scalar_select %p55, %s56, %s57
    %p61 = pneg %p55
    %p62 = scmp.eq.s32.totalorder %s8, 7
    %p63 = por %p61, %p62
    %p64 = scmp.ne.s32.totalorder %s56, %s59
    %p65 = scmp.eq.s32.totalorder %s8, 0
    %p66 = por %p64, %p65
    %p67 = scmp.ne.s32.totalorder %s56, %s59
    %p68 = scmp.eq.s32.totalorder %s13, 7
    %p69 = por %p67, %p68
    %p70 = scmp.ne.s32.totalorder %s59, %s60
    %p71 = scmp.eq.s32.totalorder %s13, 0
    %p72 = por %p70, %p71
    %p73 = scmp.ne.s32.totalorder %s59, %s60
    %p74 = scmp.eq.s32.totalorder %s14, 7
    %p75 = por %p73, %p74
    %p77 = scmp.ne.s32.totalorder %s60, %s76
    %p78 = scmp.eq.s32.totalorder %s14, 0
    %p79 = por %p77, %p78
    %s80 = ssub.s32 %s15, %s27
    %p81 = scmp.eq.s32.totalorder %s80, 0
    %s83 = sadd.s32 %s82, 1
    %s84 = scalar_select %p81, %s82, %s83
    %p87 = pneg %p81
    %p88 = scmp.eq.s32.totalorder %s8, 7
    %p89 = por %p87, %p88
    %p90 = scmp.ne.s32.totalorder %s82, %s85
    %p91 = scmp.eq.s32.totalorder %s8, 0
    %p92 = por %p90, %p91
    %p93 = scmp.ne.s32.totalorder %s82, %s85
    %p94 = scmp.eq.s32.totalorder %s13, 7
    %p95 = por %p93, %p94
    %p96 = scmp.ne.s32.totalorder %s85, %s86
    %p97 = scmp.eq.s32.totalorder %s13, 0
    %p98 = por %p96, %p97
    %p99 = scmp.ne.s32.totalorder %s85, %s86
    %p100 = scmp.eq.s32.totalorder %s14, 7
    %p101 = por %p99, %p100
    %p103 = scmp.ne.s32.totalorder %s86, %s102
    %p104 = scmp.eq.s32.totalorder %s14, 0
    %p105 = por %p103, %p104
    %p106 = scmp.le.s32.totalorder 1, %s8
    %p107 = scmp.lt.s32.totalorder %s8, 9
    %p108 = pnand %p106, %p107
    %p109 = pneg %p108
    // Predicated region
    $region9: #{energy_forces_forward.5} parent=5 // pred_check
      _
    $region10: #{energy_forces_forward.5} parent=5 // pred_check_branch
      %111 = sbr.rel (%p108) target = $region12
    $region11: #{energy_forces_forward.5} parent=5 // pred_region
      %s112 = ssub.s32 %s8, 1
    $region12: #{energy_forces_forward.5} parent=5 // pred_fallthru
      _
    %p113 = scmp.lt.s32.totalorder %s8, 8
    // Predicated region
    $region13: #{energy_forces_forward.5} parent=5 // pred_check
      %p114 = pneg %p113
    $region14: #{energy_forces_forward.5} parent=5 // pred_check_branch
      %116 = sbr.rel (%p114) target = $region16
    $region15: #{energy_forces_forward.5} parent=5 // pred_region
      // Predicated region
      $region17: #{energy_forces_forward.5} parent=15 // pred_check
        %p117 = pneg %p40
      $region18: #{energy_forces_forward.5} parent=15 // pred_check_branch
        %119 = sbr.rel (%p117) target = $region20
      $region19: #{energy_forces_forward.5} parent=15 // pred_region
        %p120 = scmp.lt.s32.totalorder %s16, 3
        %s121 = scalar_select %p120, %s16, 3
        %s122 = scalar_lea.vmem %s0, %s121
      $region20: #{energy_forces_forward.5} parent=15 // pred_fallthru
        _
      // Predicated region
      $region21: #{energy_forces_forward.5} parent=15 // pred_check
        %p123 = pneg %p66
      $region22: #{energy_forces_forward.5} parent=15 // pred_check_branch
        %125 = sbr.rel (%p123) target = $region24
      $region23: #{energy_forces_forward.5} parent=15 // pred_region
        %s126 = smul.u32 16, %s16
        %p127 = scmp.lt.s32.totalorder %s126, 63
        %s128 = scalar_select %p127, %s126, 63
        %s129 = smul.addr %s128, 4
        %s130 = scalar_lea.vmem %s1, %s129
        %s131 = smul.u32 16, %s16
      $region24: #{energy_forces_forward.5} parent=15 // pred_fallthru
        _
    $region16: #{energy_forces_forward.5} parent=5 // pred_fallthru
      _
    %p132 = scmp.le.s32.totalorder 1, %s8
    %p133 = scmp.lt.s32.totalorder %s8, 9
    %p134 = pnand %p132, %p133
    %p135 = pneg %p134
    // Predicated region
    $region25: #{energy_forces_forward.5} parent=5 // pred_check
      _
    $region26: #{energy_forces_forward.5} parent=5 // pred_check_branch
      %137 = sbr.rel (%p134) target = $region28
    $region27: #{energy_forces_forward.5} parent=5 // pred_region
      %s138 = ssub.s32 %s8, 1
      %p139 = scmp.lt.s32.totalorder %s18, 3
      %s140 = scalar_select %p139, %s18, 3
      %s141 = scalar_lea.vmem %s0, %s140
      %p142 = pneg %p46
      %p143 = pneg %p43
      %s144 = smul.u32 16, %s18
      %p145 = scmp.lt.s32.totalorder %s144, 63
      %s146 = scalar_select %p145, %s144, 63
      %s147 = smul.addr %s146, 4
      %s148 = scalar_lea.vmem %s1, %s147
      %p149 = pneg %p72
      %p150 = pneg %p69
      %p151 = pneg %p98
      %p152 = pneg %p95
      %s153 = smul.u32 16, %s17
      %p154 = scmp.lt.s32.totalorder %s153, 31
      %s155 = scalar_select %p154, %s153, 31
      %s156 = smul.addr %s155, 8
      %s157 = scalar_lea.vmem %s2, %s156
      %p158 = scmp.lt.s32.totalorder %s18, 3
      %s159 = scalar_select %p158, %s18, 3
      %s160 = scalar_lea.vmem %s0, %s159
      %s161 = smul.u32 16, %s18
      %p162 = scmp.lt.s32.totalorder %s161, 63
      %s163 = scalar_select %p162, %s161, 63
      %s164 = smul.addr %s163, 4
      %s165 = scalar_lea.vmem %s1, %s164
      %s166 = smul.u32 16, %s18
      %s167 = smul.u32 16, %s17
      %p168 = scmp.lt.s32.totalorder %s167, 31
      %s169 = scalar_select %p168, %s167, 31
      %s170 = smul.addr %s169, 8
      %s171 = scalar_lea.vmem %s2, %s170
      %s172 = smul.u32 16, %s17
      %p174 = scmp.eq.s32.totalorder %s18, 0
      // Predicated region
      $region29: #{energy_forces_forward.5} parent=27 // pred_check
        %p175 = pneg %p174
      $region30: #{energy_forces_forward.5} parent=27 // pred_check_branch
        %177 = sbr.rel (%p175) target = $region32
      $region31: #{energy_forces_forward.5} parent=27 // pred_region
        %178 = vst [vmem:[#allocation2] sm:$0xff] 0.0
        %179 = vst [vmem:[#allocation2 + $0x8] sm:$0xff] 0.0
        %180 = vst [vmem:[#allocation2 + $0x10] sm:$0xff] 0.0
        %181 = vst [vmem:[#allocation2 + $0x18] sm:$0xff] 0.0
        %182 = vst [vmem:[#allocation2 + $0x20] sm:$0xff] 0.0
        %183 = vst [vmem:[#allocation2 + $0x28] sm:$0xff] 0.0
        %184 = vst [vmem:[#allocation2 + $0x30] sm:$0xff] 0.0
        %185 = vst [vmem:[#allocation2 + $0x38] sm:$0xff] 0.0
        %186 = vst [vmem:[#allocation2 + $0x40] sm:$0xff] 0.0
        %187 = vst [vmem:[#allocation2 + $0x48] sm:$0xff] 0.0
        %188 = vst [vmem:[#allocation2 + $0x50] sm:$0xff] 0.0
        %189 = vst [vmem:[#allocation2 + $0x58] sm:$0xff] 0.0
        %190 = vst [vmem:[#allocation2 + $0x60] sm:$0xff] 0.0
        %191 = vst [vmem:[#allocation2 + $0x68] sm:$0xff] 0.0
        %192 = vst [vmem:[#allocation2 + $0x70] sm:$0xff] 0.0
        %193 = vst [vmem:[#allocation2 + $0x78] sm:$0xff] 0.0
      $region32: #{energy_forces_forward.5} parent=27 // pred_fallthru
        _
      %s194 = smul.u32 %s17, 128
      %v195 = vlaneseq
      %v196 = vshrl.u32 %v195, 7
      %v197 = vadd.s32 %v196, 8
      %v198 = vadd.s32 %v196, 16
      %v199 = vadd.s32 %v196, 24
      %v200 = vadd.s32 %v196, 32
      %v201 = vadd.s32 %v196, 40
      %v202 = vadd.s32 %v196, 48
      %v203 = vadd.s32 %v196, 56
      %v204 = vadd.s32 %v196, 64
      %v205 = vadd.s32 %v196, 72
      %v206 = vadd.s32 %v196, 80
      %v207 = vadd.s32 %v196, 88
      %v208 = vadd.s32 %v196, 96
      %v209 = vadd.s32 %v196, 104
      %v210 = vadd.s32 %v196, 112
      %v211 = vadd.s32 %v196, 120
      %v212 = vstv %s194
      %v213 = vadd.s32 %v212, %v196
      %v214 = vadd.s32 %v212, %v197
      %v215 = vadd.s32 %v212, %v198
      %v216 = vadd.s32 %v212, %v199
      %v217 = vadd.s32 %v212, %v200
      %v218 = vadd.s32 %v212, %v201
      %v219 = vadd.s32 %v212, %v202
      %v220 = vadd.s32 %v212, %v203
      %v221 = vadd.s32 %v212, %v204
      %v222 = vadd.s32 %v212, %v205
      %v223 = vadd.s32 %v212, %v206
      %v224 = vadd.s32 %v212, %v207
      %v225 = vadd.s32 %v212, %v208
      %v226 = vadd.s32 %v212, %v209
      %v227 = vadd.s32 %v212, %v210
      %v228 = vadd.s32 %v212, %v211
      %v229 = vld [vmem:[%s160] sm:$0x1]
      %v230 = vlaneseq
      %v231 = vshrl.u32 %v230, 7
      %v232 = vsub.s32 0, %v231
      %v233 = vrot.slane %v229, %v232
      %vm234 = vcmp.eq.s32.totalorder %v213, %v233
      %vm235 = vcmp.eq.s32.totalorder %v214, %v233
      %vm236 = vcmp.eq.s32.totalorder %v215, %v233
      %vm237 = vcmp.eq.s32.totalorder %v216, %v233
      %vm238 = vcmp.eq.s32.totalorder %v217, %v233
      %vm239 = vcmp.eq.s32.totalorder %v218, %v233
      %vm240 = vcmp.eq.s32.totalorder %v219, %v233
      %vm241 = vcmp.eq.s32.totalorder %v220, %v233
      %vm242 = vcmp.eq.s32.totalorder %v221, %v233
      %vm243 = vcmp.eq.s32.totalorder %v222, %v233
      %vm244 = vcmp.eq.s32.totalorder %v223, %v233
      %vm245 = vcmp.eq.s32.totalorder %v224, %v233
      %vm246 = vcmp.eq.s32.totalorder %v225, %v233
      %vm247 = vcmp.eq.s32.totalorder %v226, %v233
      %vm248 = vcmp.eq.s32.totalorder %v227, %v233
      %vm249 = vcmp.eq.s32.totalorder %v228, %v233
      %v250 = vsel %vm234, 1, 0
      %v251 = vsel %vm235, 1, 0
      %v252 = vsel %vm236, 1, 0
      %v253 = vsel %vm237, 1, 0
      %v254 = vsel %vm238, 1, 0
      %v255 = vsel %vm239, 1, 0
      %v256 = vsel %vm240, 1, 0
      %v257 = vsel %vm241, 1, 0
      %v258 = vsel %vm242, 1, 0
      %v259 = vsel %vm243, 1, 0
      %v260 = vsel %vm244, 1, 0
      %v261 = vsel %vm245, 1, 0
      %v262 = vsel %vm246, 1, 0
      %v263 = vsel %vm247, 1, 0
      %v264 = vsel %vm248, 1, 0
      %v265 = vsel %vm249, 1, 0
      %v266 = vcvt.s32.f32 %v250
      %v267 = vcvt.s32.f32 %v251
      %v268 = vcvt.s32.f32 %v252
      %v269 = vcvt.s32.f32 %v253
      %v270 = vcvt.s32.f32 %v254
      %v271 = vcvt.s32.f32 %v255
      %v272 = vcvt.s32.f32 %v256
      %v273 = vcvt.s32.f32 %v257
      %v274 = vcvt.s32.f32 %v258
      %v275 = vcvt.s32.f32 %v259
      %v276 = vcvt.s32.f32 %v260
      %v277 = vcvt.s32.f32 %v261
      %v278 = vcvt.s32.f32 %v262
      %v279 = vcvt.s32.f32 %v263
      %v280 = vcvt.s32.f32 %v264
      %v281 = vcvt.s32.f32 %v265
      %v282 = vpack.c.bf16 %v267, %v266
      %v283 = vpack.c.bf16 %v269, %v268
      %v284 = vpack.c.bf16 %v271, %v270
      %v285 = vpack.c.bf16 %v273, %v272
      %v286 = vpack.c.bf16 %v275, %v274
      %v287 = vpack.c.bf16 %v277, %v276
      %v288 = vpack.c.bf16 %v279, %v278
      %v289 = vpack.c.bf16 %v281, %v280
      %v290 = vld [vmem:[#allocation2] sm:$0xff]
      %v291 = vld [vmem:[#allocation2 + $0x8] sm:$0xff]
      %v292 = vld [vmem:[#allocation2 + $0x10] sm:$0xff]
      %v293 = vld [vmem:[#allocation2 + $0x18] sm:$0xff]
      %v294 = vld [vmem:[#allocation2 + $0x20] sm:$0xff]
      %v295 = vld [vmem:[#allocation2 + $0x28] sm:$0xff]
      %v296 = vld [vmem:[#allocation2 + $0x30] sm:$0xff]
      %v297 = vld [vmem:[#allocation2 + $0x38] sm:$0xff]
      %v298 = vld [vmem:[#allocation2 + $0x40] sm:$0xff]
      %v299 = vld [vmem:[#allocation2 + $0x48] sm:$0xff]
      %v300 = vld [vmem:[#allocation2 + $0x50] sm:$0xff]
      %v301 = vld [vmem:[#allocation2 + $0x58] sm:$0xff]
      %v302 = vld [vmem:[#allocation2 + $0x60] sm:$0xff]
      %v303 = vld [vmem:[#allocation2 + $0x68] sm:$0xff]
      %v304 = vld [vmem:[#allocation2 + $0x70] sm:$0xff]
      %v305 = vld [vmem:[#allocation2 + $0x78] sm:$0xff]
      %v306 = vld [vmem:[%s165] sm:$0xf]
      %v307 = vld [vmem:[%s165 + $0x4] sm:$0xf]
      %v308 = vld [vmem:[%s165 + $0x8] sm:$0xf]
      %v309 = vld [vmem:[%s165 + $0xc] sm:$0xf]
      %v310 = vld [vmem:[%s165 + $0x10] sm:$0xf]
      %v311 = vld [vmem:[%s165 + $0x14] sm:$0xf]
      %v312 = vld [vmem:[%s165 + $0x18] sm:$0xf]
      %v313 = vld [vmem:[%s165 + $0x1c] sm:$0xf]
      %v314 = vld [vmem:[%s165 + $0x20] sm:$0xf]
      %v315 = vld [vmem:[%s165 + $0x24] sm:$0xf]
      %v316 = vld [vmem:[%s165 + $0x28] sm:$0xf]
      %v317 = vld [vmem:[%s165 + $0x2c] sm:$0xf]
      %v318 = vld [vmem:[%s165 + $0x30] sm:$0xf]
      %v319 = vld [vmem:[%s165 + $0x34] sm:$0xf]
      %v320 = vld [vmem:[%s165 + $0x38] sm:$0xf]
      %v321 = vld [vmem:[%s165 + $0x3c] sm:$0xf]
      %v338 = vunpack.c.l.b16 %v306
      %v339 = vunpack.c.l.b16 %v307
      %v340 = vunpack.c.l.b16 %v308
      %v341 = vunpack.c.l.b16 %v309
      %v342 = vunpack.c.l.b16 %v310
      %v343 = vunpack.c.l.b16 %v311
      %v344 = vunpack.c.l.b16 %v312
      %v345 = vunpack.c.l.b16 %v313
      %v346 = vunpack.c.l.b16 %v314
      %v347 = vunpack.c.l.b16 %v315
      %v348 = vunpack.c.l.b16 %v316
      %v349 = vunpack.c.l.b16 %v317
      %v350 = vunpack.c.l.b16 %v318
      %v351 = vunpack.c.l.b16 %v319
      %v352 = vunpack.c.l.b16 %v320
      %v353 = vunpack.c.l.b16 %v321
      %v354 = vpack.c.b16 %v339, %v338
      %v355 = vpack.c.b16 %v341, %v340
      %v356 = vpack.c.b16 %v343, %v342
      %v357 = vpack.c.b16 %v345, %v344
      %v358 = vpack.c.b16 %v347, %v346
      %v359 = vpack.c.b16 %v349, %v348
      %v360 = vpack.c.b16 %v351, %v350
      %v361 = vpack.c.b16 %v353, %v352
      %370 = vmatprep.subr.bf16.mxu0 0
      %371 = vmatpush1.bf16.msra.mxu0 %v361
      %372 = vmatprep.subr.bf16.mxu0 0
      %373 = vmatpush1.bf16.msra.mxu0 %v360
      %374 = vmatprep.subr.bf16.mxu0 0
      %375 = vmatpush1.bf16.msra.mxu0 %v359
      %376 = vmatprep.subr.bf16.mxu0 0
      %377 = vmatpush1.bf16.msra.mxu0 %v358
      %378 = vmatprep.subr.bf16.mxu0 0
      %379 = vmatpush1.bf16.msra.mxu0 %v357
      %380 = vmatprep.subr.bf16.mxu0 0
      %381 = vmatpush1.bf16.msra.mxu0 %v356
      %382 = vmatprep.subr.bf16.mxu0 0
      %383 = vmatpush1.bf16.msra.mxu0 %v355
      %384 = vmatprep.subr.bf16.mxu0 0
      %385 = vmatpush1.bf16.msra.mxu0 %v354
      %386 = vmatprep.subr.bf16.mxu0 0
      %387 = vmatpush2.bf16.msra.mxu0 0
      %388 = vmatprep.subr.bf16.mxu0 0
      %389 = vmatpush2.bf16.msra.mxu0 0
      %390 = vmatprep.subr.bf16.mxu0 0
      %391 = vmatpush2.bf16.msra.mxu0 0
      %392 = vmatprep.subr.bf16.mxu0 0
      %393 = vmatpush2.bf16.msra.mxu0 0
      %394 = vmatprep.subr.bf16.mxu0 0
      %395 = vmatpush2.bf16.msra.mxu0 0
      %396 = vmatprep.subr.bf16.mxu0 0
      %397 = vmatpush2.bf16.msra.mxu0 0
      %398 = vmatprep.subr.bf16.mxu0 0
      %399 = vmatpush2.bf16.msra.mxu0 0
      %400 = vmatprep.subr.bf16.mxu0 0
      %401 = vmatpush2.bf16.msra.mxu0 0
      %402 = vmatprep.mubr.bf16.mxu0 0
      %403 = vmatmul.mubr.bf16.gmra.mxu0 %v282
      %v404 = vpop.f32.mrf.mxu0
      %v405 = vadd.f32 0.0, %v404
      %v406 = vpop.f32.mrf.mxu0
      %v407 = vpop.f32.mrf.mxu0
      %v408 = vadd.f32 0.0, %v407
      %v409 = vpop.f32.mrf.mxu0
      %410 = vmatprep.mubr.bf16.mxu0 0
      %411 = vmatmul.mubr.bf16.gmra.mxu0 %v283
      %v412 = vpop.f32.mrf.mxu0
      %v413 = vadd.f32 0.0, %v412
      %v414 = vpop.f32.mrf.mxu0
      %v415 = vpop.f32.mrf.mxu0
      %v416 = vadd.f32 0.0, %v415
      %v417 = vpop.f32.mrf.mxu0
      %418 = vmatprep.mubr.bf16.mxu0 0
      %419 = vmatmul.mubr.bf16.gmra.mxu0 %v284
      %v420 = vpop.f32.mrf.mxu0
      %v421 = vadd.f32 0.0, %v420
      %v422 = vpop.f32.mrf.mxu0
      %v423 = vpop.f32.mrf.mxu0
      %v424 = vadd.f32 0.0, %v423
      %v425 = vpop.f32.mrf.mxu0
      %426 = vmatprep.mubr.bf16.mxu0 0
      %427 = vmatmul.mubr.bf16.gmra.mxu0 %v285
      %v428 = vpop.f32.mrf.mxu0
      %v429 = vadd.f32 0.0, %v428
      %v430 = vpop.f32.mrf.mxu0
      %v431 = vpop.f32.mrf.mxu0
      %v432 = vadd.f32 0.0, %v431
      %v433 = vpop.f32.mrf.mxu0
      %434 = vmatprep.mubr.bf16.mxu0 0
      %435 = vmatmul.mubr.bf16.gmra.mxu0 %v286
      %v436 = vpop.f32.mrf.mxu0
      %v437 = vadd.f32 0.0, %v436
      %v438 = vpop.f32.mrf.mxu0
      %v439 = vpop.f32.mrf.mxu0
      %v440 = vadd.f32 0.0, %v439
      %v441 = vpop.f32.mrf.mxu0
      %442 = vmatprep.mubr.bf16.mxu0 0
      %443 = vmatmul.mubr.bf16.gmra.mxu0 %v287
      %v444 = vpop.f32.mrf.mxu0
      %v445 = vadd.f32 0.0, %v444
      %v446 = vpop.f32.mrf.mxu0
      %v447 = vpop.f32.mrf.mxu0
      %v448 = vadd.f32 0.0, %v447
      %v449 = vpop.f32.mrf.mxu0
      %450 = vmatprep.mubr.bf16.mxu0 0
      %451 = vmatmul.mubr.bf16.gmra.mxu0 %v288
      %v452 = vpop.f32.mrf.mxu0
      %v453 = vadd.f32 0.0, %v452
      %v454 = vpop.f32.mrf.mxu0
      %v455 = vpop.f32.mrf.mxu0
      %v456 = vadd.f32 0.0, %v455
      %v457 = vpop.f32.mrf.mxu0
      %458 = vmatprep.mubr.bf16.mxu0 0
      %459 = vmatmul.mubr.bf16.gmra.mxu0 %v289
      %v460 = vpop.f32.mrf.mxu0
      %v461 = vadd.f32 0.0, %v460
      %v462 = vpop.f32.mrf.mxu0
      %v463 = vpop.f32.mrf.mxu0
      %v464 = vadd.f32 0.0, %v463
      %v465 = vpop.f32.mrf.mxu0
      %466 = vdwg.mxu0
      %v467 = vadd.f32 %v290, %v405
      %v468 = vadd.f32 %v291, %v408
      %v469 = vadd.f32 %v292, %v413
      %v470 = vadd.f32 %v293, %v416
      %v471 = vadd.f32 %v294, %v421
      %v472 = vadd.f32 %v295, %v424
      %v473 = vadd.f32 %v296, %v429
      %v474 = vadd.f32 %v297, %v432
      %v475 = vadd.f32 %v298, %v437
      %v476 = vadd.f32 %v299, %v440
      %v477 = vadd.f32 %v300, %v445
      %v478 = vadd.f32 %v301, %v448
      %v479 = vadd.f32 %v302, %v453
      %v480 = vadd.f32 %v303, %v456
      %v481 = vadd.f32 %v304, %v461
      %v482 = vadd.f32 %v305, %v464
      %483 = vst [vmem:[#allocation2] sm:$0xff] %v467
      %484 = vst [vmem:[#allocation2 + $0x8] sm:$0xff] %v468
      %485 = vst [vmem:[#allocation2 + $0x10] sm:$0xff] %v469
      %486 = vst [vmem:[#allocation2 + $0x18] sm:$0xff] %v470
      %487 = vst [vmem:[#allocation2 + $0x20] sm:$0xff] %v471
      %488 = vst [vmem:[#allocation2 + $0x28] sm:$0xff] %v472
      %489 = vst [vmem:[#allocation2 + $0x30] sm:$0xff] %v473
      %490 = vst [vmem:[#allocation2 + $0x38] sm:$0xff] %v474
      %491 = vst [vmem:[#allocation2 + $0x40] sm:$0xff] %v475
      %492 = vst [vmem:[#allocation2 + $0x48] sm:$0xff] %v476
      %493 = vst [vmem:[#allocation2 + $0x50] sm:$0xff] %v477
      %494 = vst [vmem:[#allocation2 + $0x58] sm:$0xff] %v478
      %495 = vst [vmem:[#allocation2 + $0x60] sm:$0xff] %v479
      %496 = vst [vmem:[#allocation2 + $0x68] sm:$0xff] %v480
      %497 = vst [vmem:[#allocation2 + $0x70] sm:$0xff] %v481
      %498 = vst [vmem:[#allocation2 + $0x78] sm:$0xff] %v482
      %p499 = scmp.eq.s32.totalorder %s18, 3
      // Predicated region
      $region33: #{energy_forces_forward.5} parent=27 // pred_check
        %p500 = pneg %p499
      $region34: #{energy_forces_forward.5} parent=27 // pred_check_branch
        %502 = sbr.rel (%p500) target = $region36
      $region35: #{energy_forces_forward.5} parent=27 // pred_region
        %v503 = vld [vmem:[#allocation2] sm:$0xff]
        %v504 = vld [vmem:[#allocation2 + $0x8] sm:$0xff]
        %v505 = vld [vmem:[#allocation2 + $0x10] sm:$0xff]
        %v506 = vld [vmem:[#allocation2 + $0x18] sm:$0xff]
        %v507 = vld [vmem:[#allocation2 + $0x20] sm:$0xff]
        %v508 = vld [vmem:[#allocation2 + $0x28] sm:$0xff]
        %v509 = vld [vmem:[#allocation2 + $0x30] sm:$0xff]
        %v510 = vld [vmem:[#allocation2 + $0x38] sm:$0xff]
        %v511 = vld [vmem:[#allocation2 + $0x40] sm:$0xff]
        %v512 = vld [vmem:[#allocation2 + $0x48] sm:$0xff]
        %v513 = vld [vmem:[#allocation2 + $0x50] sm:$0xff]
        %v514 = vld [vmem:[#allocation2 + $0x58] sm:$0xff]
        %v515 = vld [vmem:[#allocation2 + $0x60] sm:$0xff]
        %v516 = vld [vmem:[#allocation2 + $0x68] sm:$0xff]
        %v517 = vld [vmem:[#allocation2 + $0x70] sm:$0xff]
        %v518 = vld [vmem:[#allocation2 + $0x78] sm:$0xff]
        %519 = vst [vmem:[%s171] sm:$0xff] %v503
        %520 = vst [vmem:[%s171 + $0x8] sm:$0xff] %v504
        %521 = vst [vmem:[%s171 + $0x10] sm:$0xff] %v505
        %522 = vst [vmem:[%s171 + $0x18] sm:$0xff] %v506
        %523 = vst [vmem:[%s171 + $0x20] sm:$0xff] %v507
        %524 = vst [vmem:[%s171 + $0x28] sm:$0xff] %v508
        %525 = vst [vmem:[%s171 + $0x30] sm:$0xff] %v509
        %526 = vst [vmem:[%s171 + $0x38] sm:$0xff] %v510
        %527 = vst [vmem:[%s171 + $0x40] sm:$0xff] %v511
        %528 = vst [vmem:[%s171 + $0x48] sm:$0xff] %v512
        %529 = vst [vmem:[%s171 + $0x50] sm:$0xff] %v513
        %530 = vst [vmem:[%s171 + $0x58] sm:$0xff] %v514
        %531 = vst [vmem:[%s171 + $0x60] sm:$0xff] %v515
        %532 = vst [vmem:[%s171 + $0x68] sm:$0xff] %v516
        %533 = vst [vmem:[%s171 + $0x70] sm:$0xff] %v517
        %534 = vst [vmem:[%s171 + $0x78] sm:$0xff] %v518
      $region36: #{energy_forces_forward.5} parent=27 // pred_fallthru
        _
      %s535 = smul.u32 16, %s17
      %p536 = scmp.lt.s32.totalorder %s535, 31
      %s537 = scalar_select %p536, %s535, 31
      %s538 = smul.addr %s537, 8
      %s539 = scalar_lea.vmem %s2, %s538
      // Predicated region
      $region37: #{energy_forces_forward.5} parent=27 // pred_check
        %p540 = pneg %p95
      $region38: #{energy_forces_forward.5} parent=27 // pred_check_branch
        %542 = sbr.rel (%p540) target = $region40
      $region39: #{energy_forces_forward.5} parent=27 // pred_region
        %s543 = smul.u32 16, %s17
      $region40: #{energy_forces_forward.5} parent=27 // pred_fallthru
        _
    $region28: #{energy_forces_forward.5} parent=5 // pred_fallthru
      _
    %p544 = scmp.le.s32.totalorder 2, %s8
    // Predicated region
    $region41: #{energy_forces_forward.5} parent=5 // pred_check
      %p545 = pneg %p544
    $region42: #{energy_forces_forward.5} parent=5 // pred_check_branch
      %547 = sbr.rel (%p545) target = $region44
    $region43: #{energy_forces_forward.5} parent=5 // pred_region
      %s548 = ssub.s32 %s8, 2
      // Predicated region
      $region45: #{energy_forces_forward.5} parent=43 // pred_check
        %p549 = pneg %p101
      $region46: #{energy_forces_forward.5} parent=43 // pred_check_branch
        %551 = sbr.rel (%p549) target = $region48
      $region47: #{energy_forces_forward.5} parent=43 // pred_region
        %s552 = smul.u32 16, %s19
        %p553 = scmp.lt.s32.totalorder %s552, 31
        %s554 = scalar_select %p553, %s552, 31
        %s555 = smul.addr %s554, 8
        %s556 = scalar_lea.vmem %s2, %s555
      $region48: #{energy_forces_forward.5} parent=43 // pred_fallthru
        _
    $region44: #{energy_forces_forward.5} parent=5 // pred_fallthru
      _
  $region6: #{energy_forces_forward.5} parent=0 // loop_footer
    %s12 = sadd.s32 1, %s8
  $region7: #{energy_forces_forward.5} parent=0 // loop_footer_branch
    %7 = sbr.rel target = $region3
  $region8: #{energy_forces_forward.5} parent=0 // loop_exit
    _

// kernel: energy_forces_forward.3
$region0: #{energy_forces_forward.3}
  #allocation0 [shape = 'u32[]', space=smem, size = 0x4, offset = 0x4, fixed_abs, tag = 'smem constant byte address 0x4 - core index']
  #allocation1 [shape = 'u32[144,128]{1,0:T(1,128)}', space=vmem, size = 0x12000, scoped, tag = 'internal scratch']
  #allocation2 [shape = 'f32[8,128]{1,0:T(8,128)}', space=vmem, size = 0x1000, scoped, tag = 'scratch operand']
  %s0 = inlined_call_operand.vmem [shape: s32[1,256], index: 0, kind: input, shape index: {}]
  %s1 = inlined_call_operand.vmem [shape: bf16[256,128], index: 1, kind: input, shape index: {}]
  %s2 = inlined_call_operand.vmem [shape: bf16[128,128], index: 2, kind: input, shape index: {}]
  %s3 = inlined_call_operand.vmem [shape: f32[1,128], index: 3, kind: input, shape index: {}]
  %s4 = inlined_call_operand.vmem [shape: f32[8,1], index: 4, kind: output, shape index: {}]
  %s5 = sld [smem:[#allocation0]]
  $region57: #{energy_forces_forward.3} parent=0
    _
  %s7 = ssub.s32 1, %s5
  %s8 = scalar_select 0, %s7, %s5
  loop: start=0, step=1, limit=4
  $region2: #{energy_forces_forward.3} parent=0 // loop_pre_header
    _
  $region3: #{energy_forces_forward.3} parent=0 // loop_header
    %s10 = sphi 0, %s14
    %p11 = scmp.ge.s32.totalorder %s10, 4
    %s20 = sphi 0, %s22
    %s23 = sphi 0, %s20
    %s24 = sphi 0, %s23
    %s40 = sphi 0, %s24
    %s46 = sphi 0, %s48
    %s49 = sphi 0, %s46
    %s50 = sphi 0, %s49
    %s66 = sphi 0, %s50
    %s70 = sphi 0, %s70
    %s72 = sphi 0, %s70
    %s73 = sphi 0, %s72
    %s87 = sphi 0, %s73
    %s91 = sphi 0, %s91
    %s93 = sphi 0, %s91
    %s94 = sphi 0, %s93
    %s108 = sphi 0, %s94
    %s112 = sphi 0, %s112
    %s114 = sphi 0, %s112
    %s115 = sphi 0, %s114
    %s129 = sphi 0, %s115
  $region4: #{energy_forces_forward.3} parent=0 // loop_header_branch
    %13 = sbr.rel (%p11) target = $region8
  $region5: #{energy_forces_forward.3} parent=0 // loop_body
    %s15 = ssub.s32 %s10, 1
    %s16 = ssub.s32 %s10, 2
    %s17 = sadd.s32 %s10, 1
    %s18 = ssub.s32 %s10, %s17
    %p19 = scmp.eq.s32.totalorder %s18, 0
    %s21 = sadd.s32 %s20, 1
    %s22 = scalar_select %p19, %s20, %s21
    %p25 = pneg %p19
    %p26 = scmp.eq.s32.totalorder %s10, 1
    %p27 = por %p25, %p26
    %p28 = scmp.ne.s32.totalorder %s20, %s23
    %p29 = scmp.eq.s32.totalorder %s10, 0
    %p30 = por %p28, %p29
    %p31 = scmp.ne.s32.totalorder %s20, %s23
    %p32 = scmp.eq.s32.totalorder %s15, 1
    %p33 = por %p31, %p32
    %p34 = scmp.ne.s32.totalorder %s23, %s24
    %p35 = scmp.eq.s32.totalorder %s15, 0
    %p36 = por %p34, %p35
    %p37 = scmp.ne.s32.totalorder %s23, %s24
    %p38 = scmp.eq.s32.totalorder %s16, 1
    %p39 = por %p37, %p38
    %p41 = scmp.ne.s32.totalorder %s24, %s40
    %p42 = scmp.eq.s32.totalorder %s16, 0
    %p43 = por %p41, %p42
    %s44 = ssub.s32 %s10, %s17
    %p45 = scmp.eq.s32.totalorder %s44, 0
    %s47 = sadd.s32 %s46, 1
    %s48 = scalar_select %p45, %s46, %s47
    %p51 = pneg %p45
    %p52 = scmp.eq.s32.totalorder %s10, 1
    %p53 = por %p51, %p52
    %p54 = scmp.ne.s32.totalorder %s46, %s49
    %p55 = scmp.eq.s32.totalorder %s10, 0
    %p56 = por %p54, %p55
    %p57 = scmp.ne.s32.totalorder %s46, %s49
    %p58 = scmp.eq.s32.totalorder %s15, 1
    %p59 = por %p57, %p58
    %p60 = scmp.ne.s32.totalorder %s49, %s50
    %p61 = scmp.eq.s32.totalorder %s15, 0
    %p62 = por %p60, %p61
    %p63 = scmp.ne.s32.totalorder %s49, %s50
    %p64 = scmp.eq.s32.totalorder %s16, 1
    %p65 = por %p63, %p64
    %p67 = scmp.ne.s32.totalorder %s50, %s66
    %p68 = scmp.eq.s32.totalorder %s16, 0
    %p69 = por %p67, %p68
    %s71 = sadd.s32 %s70, 1
    %p74 = scmp.eq.s32.totalorder %s10, 1
    %p75 = scmp.ne.s32.totalorder %s70, %s72
    %p76 = scmp.eq.s32.totalorder %s10, 0
    %p77 = por %p75, %p76
    %p78 = scmp.ne.s32.totalorder %s70, %s72
    %p79 = scmp.eq.s32.totalorder %s15, 1
    %p80 = por %p78, %p79
    %p81 = scmp.ne.s32.totalorder %s72, %s73
    %p82 = scmp.eq.s32.totalorder %s15, 0
    %p83 = por %p81, %p82
    %p84 = scmp.ne.s32.totalorder %s72, %s73
    %p85 = scmp.eq.s32.totalorder %s16, 1
    %p86 = por %p84, %p85
    %p88 = scmp.ne.s32.totalorder %s73, %s87
    %p89 = scmp.eq.s32.totalorder %s16, 0
    %p90 = por %p88, %p89
    %s92 = sadd.s32 %s91, 1
    %p95 = scmp.eq.s32.totalorder %s10, 1
    %p96 = scmp.ne.s32.totalorder %s91, %s93
    %p97 = scmp.eq.s32.totalorder %s10, 0
    %p98 = por %p96, %p97
    %p99 = scmp.ne.s32.totalorder %s91, %s93
    %p100 = scmp.eq.s32.totalorder %s15, 1
    %p101 = por %p99, %p100
    %p102 = scmp.ne.s32.totalorder %s93, %s94
    %p103 = scmp.eq.s32.totalorder %s15, 0
    %p104 = por %p102, %p103
    %p105 = scmp.ne.s32.totalorder %s93, %s94
    %p106 = scmp.eq.s32.totalorder %s16, 1
    %p107 = por %p105, %p106
    %p109 = scmp.ne.s32.totalorder %s94, %s108
    %p110 = scmp.eq.s32.totalorder %s16, 0
    %p111 = por %p109, %p110
    %s113 = sadd.s32 %s112, 1
    %p116 = scmp.eq.s32.totalorder %s10, 1
    %p117 = scmp.ne.s32.totalorder %s112, %s114
    %p118 = scmp.eq.s32.totalorder %s10, 0
    %p119 = por %p117, %p118
    %p120 = scmp.ne.s32.totalorder %s112, %s114
    %p121 = scmp.eq.s32.totalorder %s15, 1
    %p122 = por %p120, %p121
    %p123 = scmp.ne.s32.totalorder %s114, %s115
    %p124 = scmp.eq.s32.totalorder %s15, 0
    %p125 = por %p123, %p124
    %p126 = scmp.ne.s32.totalorder %s114, %s115
    %p127 = scmp.eq.s32.totalorder %s16, 1
    %p128 = por %p126, %p127
    %p130 = scmp.ne.s32.totalorder %s115, %s129
    %p131 = scmp.eq.s32.totalorder %s16, 0
    %p132 = por %p130, %p131
    %p133 = scmp.le.s32.totalorder 1, %s10
    %p134 = scmp.lt.s32.totalorder %s10, 3
    %p135 = pnand %p133, %p134
    %p136 = pneg %p135
    // Predicated region
    $region9: #{energy_forces_forward.3} parent=5 // pred_check
      _
    $region10: #{energy_forces_forward.3} parent=5 // pred_check_branch
      %138 = sbr.rel (%p135) target = $region12
    $region11: #{energy_forces_forward.3} parent=5 // pred_region
      %s139 = ssub.s32 %s10, 1
      // Predicated region
      $region13: #{energy_forces_forward.3} parent=11 // pred_check
        %p140 = pneg %p83
      $region14: #{energy_forces_forward.3} parent=11 // pred_check_branch
        %142 = sbr.rel (%p140) target = $region16
      $region15: #{energy_forces_forward.3} parent=11 // pred_region
        _
      $region16: #{energy_forces_forward.3} parent=11 // pred_fallthru
        _
      // Predicated region
      $region17: #{energy_forces_forward.3} parent=11 // pred_check
        %p143 = pneg %p104
      $region18: #{energy_forces_forward.3} parent=11 // pred_check_branch
        %145 = sbr.rel (%p143) target = $region20
      $region19: #{energy_forces_forward.3} parent=11 // pred_region
        _
      $region20: #{energy_forces_forward.3} parent=11 // pred_fallthru
        _
    $region12: #{energy_forces_forward.3} parent=5 // pred_fallthru
      _
    %p146 = scmp.lt.s32.totalorder %s10, 2
    // Predicated region
    $region21: #{energy_forces_forward.3} parent=5 // pred_check
      %p147 = pneg %p146
    $region22: #{energy_forces_forward.3} parent=5 // pred_check_branch
      %149 = sbr.rel (%p147) target = $region24
    $region23: #{energy_forces_forward.3} parent=5 // pred_region
      // Predicated region
      $region25: #{energy_forces_forward.3} parent=23 // pred_check
        %p150 = pneg %p30
      $region26: #{energy_forces_forward.3} parent=23 // pred_check_branch
        %152 = sbr.rel (%p150) target = $region28
      $region27: #{energy_forces_forward.3} parent=23 // pred_region
        %p153 = scmp.lt.s32.totalorder %s10, 1
        %s154 = scalar_select %p153, %s10, 1
        %s155 = scalar_lea.vmem %s0, %s154
      $region28: #{energy_forces_forward.3} parent=23 // pred_fallthru
        _
      // Predicated region
      $region29: #{energy_forces_forward.3} parent=23 // pred_check
        %p156 = pneg %p56
      $region30: #{energy_forces_forward.3} parent=23 // pred_check_branch
        %158 = sbr.rel (%p156) target = $region32
      $region31: #{energy_forces_forward.3} parent=23 // pred_region
        %s159 = smul.u32 16, %s10
        %p160 = scmp.lt.s32.totalorder %s159, 31
        %s161 = scalar_select %p160, %s159, 31
        %s162 = smul.addr %s161, 4
        %s163 = scalar_lea.vmem %s1, %s162
        %s164 = smul.u32 16, %s10
      $region32: #{energy_forces_forward.3} parent=23 // pred_fallthru
        _
    $region24: #{energy_forces_forward.3} parent=5 // pred_fallthru
      _
    %p165 = scmp.le.s32.totalorder 1, %s10
    %p166 = scmp.lt.s32.totalorder %s10, 3
    %p167 = pnand %p165, %p166
    %p168 = pneg %p167
    // Predicated region
    $region33: #{energy_forces_forward.3} parent=5 // pred_check
      _
    $region34: #{energy_forces_forward.3} parent=5 // pred_check_branch
      %170 = sbr.rel (%p167) target = $region36
    $region35: #{energy_forces_forward.3} parent=5 // pred_region
      %s171 = ssub.s32 %s10, 1
      %p172 = scmp.lt.s32.totalorder %s15, 1
      %s173 = scalar_select %p172, %s15, 1
      %s174 = scalar_lea.vmem %s0, %s173
      %p175 = pneg %p36
      %p176 = pneg %p33
      %s177 = smul.u32 16, %s15
      %p178 = scmp.lt.s32.totalorder %s177, 31
      %s179 = scalar_select %p178, %s177, 31
      %s180 = smul.addr %s179, 4
      %s181 = scalar_lea.vmem %s1, %s180
      %p182 = pneg %p62
      %p183 = pneg %p59
      %p184 = pneg %p83
      %p185 = pneg %p80
      %p186 = pneg %p104
      %p187 = pneg %p101
      %p188 = pneg %p125
      %p189 = pneg %p122
      %p190 = scmp.lt.s32.totalorder %s15, 1
      %s191 = scalar_select %p190, %s15, 1
      %s192 = scalar_lea.vmem %s0, %s191
      %s193 = smul.u32 16, %s15
      %p194 = scmp.lt.s32.totalorder %s193, 31
      %s195 = scalar_select %p194, %s193, 31
      %s196 = smul.addr %s195, 4
      %s197 = scalar_lea.vmem %s1, %s196
      %s198 = smul.u32 16, %s15
      %p200 = scmp.eq.s32.totalorder %s15, 0
      // Predicated region
      $region37: #{energy_forces_forward.3} parent=35 // pred_check
        %p201 = pneg %p200
      $region38: #{energy_forces_forward.3} parent=35 // pred_check_branch
        %203 = sbr.rel (%p201) target = $region40
      $region39: #{energy_forces_forward.3} parent=35 // pred_region
        %204 = vst [vmem:[#allocation2] sm:$0xff] 0.0
      $region40: #{energy_forces_forward.3} parent=35 // pred_fallthru
        _
      %v205 = vld [vmem:[%s197] sm:$0xf]
      %v206 = vld [vmem:[%s197 + $0x4] sm:$0xf]
      %v207 = vld [vmem:[%s197 + $0x8] sm:$0xf]
      %v208 = vld [vmem:[%s197 + $0xc] sm:$0xf]
      %v209 = vld [vmem:[%s197 + $0x10] sm:$0xf]
      %v210 = vld [vmem:[%s197 + $0x14] sm:$0xf]
      %v211 = vld [vmem:[%s197 + $0x18] sm:$0xf]
      %v212 = vld [vmem:[%s197 + $0x1c] sm:$0xf]
      %v213 = vld [vmem:[%s197 + $0x20] sm:$0xf]
      %v214 = vld [vmem:[%s197 + $0x24] sm:$0xf]
      %v215 = vld [vmem:[%s197 + $0x28] sm:$0xf]
      %v216 = vld [vmem:[%s197 + $0x2c] sm:$0xf]
      %v217 = vld [vmem:[%s197 + $0x30] sm:$0xf]
      %v218 = vld [vmem:[%s197 + $0x34] sm:$0xf]
      %v219 = vld [vmem:[%s197 + $0x38] sm:$0xf]
      %v220 = vld [vmem:[%s197 + $0x3c] sm:$0xf]
      %v221 = vld [vmem:[%s2] sm:$0xf]
      %v222 = vld [vmem:[%s2 + $0x4] sm:$0xf]
      %v223 = vld [vmem:[%s2 + $0x8] sm:$0xf]
      %v224 = vld [vmem:[%s2 + $0xc] sm:$0xf]
      %v225 = vld [vmem:[%s2 + $0x10] sm:$0xf]
      %v226 = vld [vmem:[%s2 + $0x14] sm:$0xf]
      %v227 = vld [vmem:[%s2 + $0x18] sm:$0xf]
      %v228 = vld [vmem:[%s2 + $0x1c] sm:$0xf]
      %v229 = vld [vmem:[%s2 + $0x20] sm:$0xf]
      %v230 = vld [vmem:[%s2 + $0x24] sm:$0xf]
      %v231 = vld [vmem:[%s2 + $0x28] sm:$0xf]
      %v232 = vld [vmem:[%s2 + $0x2c] sm:$0xf]
      %v233 = vld [vmem:[%s2 + $0x30] sm:$0xf]
      %v234 = vld [vmem:[%s2 + $0x34] sm:$0xf]
      %v235 = vld [vmem:[%s2 + $0x38] sm:$0xf]
      %v236 = vld [vmem:[%s2 + $0x3c] sm:$0xf]
      %v253 = vunpack.c.l.b16 %v205
      %v254 = vunpack.c.l.b16 %v206
      %v255 = vunpack.c.l.b16 %v207
      %v256 = vunpack.c.l.b16 %v208
      %v257 = vunpack.c.l.b16 %v209
      %v258 = vunpack.c.l.b16 %v210
      %v259 = vunpack.c.l.b16 %v211
      %v260 = vunpack.c.l.b16 %v212
      %v261 = vunpack.c.l.b16 %v213
      %v262 = vunpack.c.l.b16 %v214
      %v263 = vunpack.c.l.b16 %v215
      %v264 = vunpack.c.l.b16 %v216
      %v265 = vunpack.c.l.b16 %v217
      %v266 = vunpack.c.l.b16 %v218
      %v267 = vunpack.c.l.b16 %v219
      %v268 = vunpack.c.l.b16 %v220
      %v269 = vpack.c.b16 %v254, %v253
      %v270 = vpack.c.b16 %v256, %v255
      %v271 = vpack.c.b16 %v258, %v257
      %v272 = vpack.c.b16 %v260, %v259
      %v273 = vpack.c.b16 %v262, %v261
      %v274 = vpack.c.b16 %v264, %v263
      %v275 = vpack.c.b16 %v266, %v265
      %v276 = vpack.c.b16 %v268, %v267
      %v301 = vunpack.c.l.b16 %v221
      %v302 = vunpack.c.l.b16 %v222
      %v303 = vunpack.c.l.b16 %v223
      %v304 = vunpack.c.l.b16 %v224
      %v305 = vunpack.c.l.b16 %v225
      %v306 = vunpack.c.l.b16 %v226
      %v307 = vunpack.c.l.b16 %v227
      %v308 = vunpack.c.l.b16 %v228
      %v309 = vunpack.c.l.b16 %v229
      %v310 = vunpack.c.l.b16 %v230
      %v311 = vunpack.c.l.b16 %v231
      %v312 = vunpack.c.l.b16 %v232
      %v313 = vunpack.c.l.b16 %v233
      %v314 = vunpack.c.l.b16 %v234
      %v315 = vunpack.c.l.b16 %v235
      %v316 = vunpack.c.l.b16 %v236
      %v317 = vpack.c.b16 %v302, %v301
      %v318 = vpack.c.b16 %v304, %v303
      %v319 = vpack.c.b16 %v306, %v305
      %v320 = vpack.c.b16 %v308, %v307
      %v321 = vpack.c.b16 %v310, %v309
      %v322 = vpack.c.b16 %v312, %v311
      %v323 = vpack.c.b16 %v314, %v313
      %v324 = vpack.c.b16 %v316, %v315
      %333 = vmatprep.subr.bf16.mxu0 0
      %334 = vmatpush1.bf16.msra.mxu0 %v324
      %335 = vmatprep.subr.bf16.mxu0 0
      %336 = vmatpush1.bf16.msra.mxu0 %v323
      %337 = vmatprep.subr.bf16.mxu0 0
      %338 = vmatpush1.bf16.msra.mxu0 %v322
      %339 = vmatprep.subr.bf16.mxu0 0
      %340 = vmatpush1.bf16.msra.mxu0 %v321
      %341 = vmatprep.subr.bf16.mxu0 0
      %342 = vmatpush1.bf16.msra.mxu0 %v320
      %343 = vmatprep.subr.bf16.mxu0 0
      %344 = vmatpush1.bf16.msra.mxu0 %v319
      %345 = vmatprep.subr.bf16.mxu0 0
      %346 = vmatpush1.bf16.msra.mxu0 %v318
      %347 = vmatprep.subr.bf16.mxu0 0
      %348 = vmatpush1.bf16.msra.mxu0 %v317
      %349 = vmatprep.subr.bf16.mxu0 0
      %350 = vmatpush2.bf16.msra.mxu0 0
      %351 = vmatprep.subr.bf16.mxu0 0
      %352 = vmatpush2.bf16.msra.mxu0 0
      %353 = vmatprep.subr.bf16.mxu0 0
      %354 = vmatpush2.bf16.msra.mxu0 0
      %355 = vmatprep.subr.bf16.mxu0 0
      %356 = vmatpush2.bf16.msra.mxu0 0
      %357 = vmatprep.subr.bf16.mxu0 0
      %358 = vmatpush2.bf16.msra.mxu0 0
      %359 = vmatprep.subr.bf16.mxu0 0
      %360 = vmatpush2.bf16.msra.mxu0 0
      %361 = vmatprep.subr.bf16.mxu0 0
      %362 = vmatpush2.bf16.msra.mxu0 0
      %363 = vmatprep.subr.bf16.mxu0 0
      %364 = vmatpush2.bf16.msra.mxu0 0
      %365 = vmatprep.mubr.bf16.mxu0 0
      %366 = vmatmul.mubr.bf16.gmra.mxu0 %v269
      %v367 = vpop.f32.mrf.mxu0
      %v368 = vadd.f32 0.0, %v367
      %v369 = vpop.f32.mrf.mxu0
      %v370 = vpop.f32.mrf.mxu0
      %v371 = vadd.f32 0.0, %v370
      %v372 = vpop.f32.mrf.mxu0
      %373 = vmatprep.mubr.bf16.mxu0 0
      %374 = vmatmul.mubr.bf16.gmra.mxu0 %v270
      %v375 = vpop.f32.mrf.mxu0
      %v376 = vadd.f32 0.0, %v375
      %v377 = vpop.f32.mrf.mxu0
      %v378 = vpop.f32.mrf.mxu0
      %v379 = vadd.f32 0.0, %v378
      %v380 = vpop.f32.mrf.mxu0
      %381 = vmatprep.mubr.bf16.mxu0 0
      %382 = vmatmul.mubr.bf16.gmra.mxu0 %v271
      %v383 = vpop.f32.mrf.mxu0
      %v384 = vadd.f32 0.0, %v383
      %v385 = vpop.f32.mrf.mxu0
      %v386 = vpop.f32.mrf.mxu0
      %v387 = vadd.f32 0.0, %v386
      %v388 = vpop.f32.mrf.mxu0
      %389 = vmatprep.mubr.bf16.mxu0 0
      %390 = vmatmul.mubr.bf16.gmra.mxu0 %v272
      %v391 = vpop.f32.mrf.mxu0
      %v392 = vadd.f32 0.0, %v391
      %v393 = vpop.f32.mrf.mxu0
      %v394 = vpop.f32.mrf.mxu0
      %v395 = vadd.f32 0.0, %v394
      %v396 = vpop.f32.mrf.mxu0
      %397 = vmatprep.mubr.bf16.mxu0 0
      %398 = vmatmul.mubr.bf16.gmra.mxu0 %v273
      %v399 = vpop.f32.mrf.mxu0
      %v400 = vadd.f32 0.0, %v399
      %v401 = vpop.f32.mrf.mxu0
      %v402 = vpop.f32.mrf.mxu0
      %v403 = vadd.f32 0.0, %v402
      %v404 = vpop.f32.mrf.mxu0
      %405 = vmatprep.mubr.bf16.mxu0 0
      %406 = vmatmul.mubr.bf16.gmra.mxu0 %v274
      %v407 = vpop.f32.mrf.mxu0
      %v408 = vadd.f32 0.0, %v407
      %v409 = vpop.f32.mrf.mxu0
      %v410 = vpop.f32.mrf.mxu0
      %v411 = vadd.f32 0.0, %v410
      %v412 = vpop.f32.mrf.mxu0
      %413 = vmatprep.mubr.bf16.mxu0 0
      %414 = vmatmul.mubr.bf16.gmra.mxu0 %v275
      %v415 = vpop.f32.mrf.mxu0
      %v416 = vadd.f32 0.0, %v415
      %v417 = vpop.f32.mrf.mxu0
      %v418 = vpop.f32.mrf.mxu0
      %v419 = vadd.f32 0.0, %v418
      %v420 = vpop.f32.mrf.mxu0
      %421 = vmatprep.mubr.bf16.mxu0 0
      %422 = vmatmul.mubr.bf16.gmra.mxu0 %v276
      %v423 = vpop.f32.mrf.mxu0
      %v424 = vadd.f32 0.0, %v423
      %v425 = vpop.f32.mrf.mxu0
      %v426 = vpop.f32.mrf.mxu0
      %v427 = vadd.f32 0.0, %v426
      %v428 = vpop.f32.mrf.mxu0
      %429 = vdwg.mxu0
      %v430 = vxor.u32 %v368, 2147483648
      %v431 = vxor.u32 %v371, 2147483648
      %v432 = vxor.u32 %v376, 2147483648
      %v433 = vxor.u32 %v379, 2147483648
      %v434 = vxor.u32 %v384, 2147483648
      %v435 = vxor.u32 %v387, 2147483648
      %v436 = vxor.u32 %v392, 2147483648
      %v437 = vxor.u32 %v395, 2147483648
      %v438 = vxor.u32 %v400, 2147483648
      %v439 = vxor.u32 %v403, 2147483648
      %v440 = vxor.u32 %v408, 2147483648
      %v441 = vxor.u32 %v411, 2147483648
      %v442 = vxor.u32 %v416, 2147483648
      %v443 = vxor.u32 %v419, 2147483648
      %v444 = vxor.u32 %v424, 2147483648
      %v445 = vxor.u32 %v427, 2147483648
      %v446 = vmul.f32 %v430, 1.442695
      %v447 = vpow.pop %v446
      %v448 = vmul.f32 %v431, 1.442695
      %v449 = vpow.pop %v448
      %v450 = vmul.f32 %v432, 1.442695
      %v451 = vpow.pop %v450
      %v452 = vmul.f32 %v433, 1.442695
      %v453 = vpow.pop %v452
      %v454 = vmul.f32 %v434, 1.442695
      %v455 = vpow.pop %v454
      %v456 = vmul.f32 %v435, 1.442695
      %v457 = vpow.pop %v456
      %v458 = vmul.f32 %v436, 1.442695
      %v459 = vpow.pop %v458
      %v460 = vmul.f32 %v437, 1.442695
      %v461 = vpow.pop %v460
      %v462 = vmul.f32 %v438, 1.442695
      %v463 = vpow.pop %v462
      %v464 = vmul.f32 %v439, 1.442695
      %v465 = vpow.pop %v464
      %v466 = vmul.f32 %v440, 1.442695
      %v467 = vpow.pop %v466
      %v468 = vmul.f32 %v441, 1.442695
      %v469 = vpow.pop %v468
      %v470 = vmul.f32 %v442, 1.442695
      %v471 = vpow.pop %v470
      %v472 = vmul.f32 %v443, 1.442695
      %v473 = vpow.pop %v472
      %v474 = vmul.f32 %v444, 1.442695
      %v475 = vpow.pop %v474
      %v476 = vmul.f32 %v445, 1.442695
      %v477 = vpow.pop %v476
      %v478 = vadd.f32 %v447, 1.0
      %v479 = vadd.f32 %v449, 1.0
      %v480 = vadd.f32 %v451, 1.0
      %v481 = vadd.f32 %v453, 1.0
      %v482 = vadd.f32 %v455, 1.0
      %v483 = vadd.f32 %v457, 1.0
      %v484 = vadd.f32 %v459, 1.0
      %v485 = vadd.f32 %v461, 1.0
      %v486 = vadd.f32 %v463, 1.0
      %v487 = vadd.f32 %v465, 1.0
      %v488 = vadd.f32 %v467, 1.0
      %v489 = vadd.f32 %v469, 1.0
      %v490 = vadd.f32 %v471, 1.0
      %v491 = vadd.f32 %v473, 1.0
      %v492 = vadd.f32 %v475, 1.0
      %v493 = vadd.f32 %v477, 1.0
      %v494 = vrcp.pop %v478
      %v495 = vmul.f32 1.0, %v494
      %v496 = vrcp.pop %v479
      %v497 = vmul.f32 1.0, %v496
      %v498 = vrcp.pop %v480
      %v499 = vmul.f32 1.0, %v498
      %v500 = vrcp.pop %v481
      %v501 = vmul.f32 1.0, %v500
      %v502 = vrcp.pop %v482
      %v503 = vmul.f32 1.0, %v502
      %v504 = vrcp.pop %v483
      %v505 = vmul.f32 1.0, %v504
      %v506 = vrcp.pop %v484
      %v507 = vmul.f32 1.0, %v506
      %v508 = vrcp.pop %v485
      %v509 = vmul.f32 1.0, %v508
      %v510 = vrcp.pop %v486
      %v511 = vmul.f32 1.0, %v510
      %v512 = vrcp.pop %v487
      %v513 = vmul.f32 1.0, %v512
      %v514 = vrcp.pop %v488
      %v515 = vmul.f32 1.0, %v514
      %v516 = vrcp.pop %v489
      %v517 = vmul.f32 1.0, %v516
      %v518 = vrcp.pop %v490
      %v519 = vmul.f32 1.0, %v518
      %v520 = vrcp.pop %v491
      %v521 = vmul.f32 1.0, %v520
      %v522 = vrcp.pop %v492
      %v523 = vmul.f32 1.0, %v522
      %v524 = vrcp.pop %v493
      %v525 = vmul.f32 1.0, %v524
      %v526 = vmul.f32 %v368, %v495
      %v527 = vmul.f32 %v371, %v497
      %v528 = vmul.f32 %v376, %v499
      %v529 = vmul.f32 %v379, %v501
      %v530 = vmul.f32 %v384, %v503
      %v531 = vmul.f32 %v387, %v505
      %v532 = vmul.f32 %v392, %v507
      %v533 = vmul.f32 %v395, %v509
      %v534 = vmul.f32 %v400, %v511
      %v535 = vmul.f32 %v403, %v513
      %v536 = vmul.f32 %v408, %v515
      %v537 = vmul.f32 %v411, %v517
      %v538 = vmul.f32 %v416, %v519
      %v539 = vmul.f32 %v419, %v521
      %v540 = vmul.f32 %v424, %v523
      %v541 = vmul.f32 %v427, %v525
      %v542 = vlaneseq
      %v543 = vshrl.u32 %v542, 7
      %v544 = vld [vmem:[%s192] sm:$0x1]
      %v545 = vlaneseq
      %v546 = vshrl.u32 %v545, 7
      %v547 = vsub.s32 0, %v546
      %v548 = vrot.slane %v544, %v547
      %vm549 = vcmp.eq.s32.totalorder %v543, %v548
      %v550 = vsel %vm549, 1, 0
      %v551 = vcvt.s32.f32 %v550
      %v552 = vld [vmem:[#allocation2] sm:$0xff]
      %553 = vmatprep.subr.mxu0 0.0
      %554 = vmatpush1.msra.mxu0 %v541
      %555 = vmatprep.subr.mxu0 0.0
      %556 = vmatpush1.msra.mxu0 %v540
      %557 = vmatprep.subr.mxu0 0.0
      %558 = vmatpush1.msra.mxu0 %v539
      %559 = vmatprep.subr.mxu0 0.0
      %560 = vmatpush1.msra.mxu0 %v538
      %561 = vmatprep.subr.mxu0 0.0
      %562 = vmatpush1.msra.mxu0 %v537
      %563 = vmatprep.subr.mxu0 0.0
      %564 = vmatpush1.msra.mxu0 %v536
      %565 = vmatprep.subr.mxu0 0.0
      %566 = vmatpush1.msra.mxu0 %v535
      %567 = vmatprep.subr.mxu0 0.0
      %568 = vmatpush1.msra.mxu0 %v534
      %569 = vmatprep.subr.mxu0 0.0
      %570 = vmatpush1.msra.mxu0 %v533
      %571 = vmatprep.subr.mxu0 0.0
      %572 = vmatpush1.msra.mxu0 %v532
      %573 = vmatprep.subr.mxu0 0.0
      %574 = vmatpush1.msra.mxu0 %v531
      %575 = vmatprep.subr.mxu0 0.0
      %576 = vmatpush1.msra.mxu0 %v530
      %577 = vmatprep.subr.mxu0 0.0
      %578 = vmatpush1.msra.mxu0 %v529
      %579 = vmatprep.subr.mxu0 0.0
      %580 = vmatpush1.msra.mxu0 %v528
      %581 = vmatprep.subr.mxu0 0.0
      %582 = vmatpush1.msra.mxu0 %v527
      %583 = vmatprep.subr.mxu0 0.0
      %584 = vmatpush1.msra.mxu0 %v526
      %585 = vmatprep.subr.mxu0 0.0
      %586 = vmatpush2.msra.mxu0 0.0
      %587 = vmatprep.subr.mxu0 0.0
      %588 = vmatpush2.msra.mxu0 0.0
      %589 = vmatprep.subr.mxu0 0.0
      %590 = vmatpush2.msra.mxu0 0.0
      %591 = vmatprep.subr.mxu0 0.0
      %592 = vmatpush2.msra.mxu0 0.0
      %593 = vmatprep.subr.mxu0 0.0
      %594 = vmatpush2.msra.mxu0 0.0
      %595 = vmatprep.subr.mxu0 0.0
      %596 = vmatpush2.msra.mxu0 0.0
      %597 = vmatprep.subr.mxu0 0.0
      %598 = vmatpush2.msra.mxu0 0.0
      %599 = vmatprep.subr.mxu0 0.0
      %600 = vmatpush2.msra.mxu0 0.0
      %601 = vmatprep.subr.mxu0 0.0
      %602 = vmatpush2.msra.mxu0 0.0
      %603 = vmatprep.subr.mxu0 0.0
      %604 = vmatpush2.msra.mxu0 0.0
      %605 = vmatprep.subr.mxu0 0.0
      %606 = vmatpush2.msra.mxu0 0.0
      %607 = vmatprep.subr.mxu0 0.0
      %608 = vmatpush2.msra.mxu0 0.0
      %609 = vmatprep.subr.mxu0 0.0
      %610 = vmatpush2.msra.mxu0 0.0
      %611 = vmatprep.subr.mxu0 0.0
      %612 = vmatpush2.msra.mxu0 0.0
      %613 = vmatprep.subr.mxu0 0.0
      %614 = vmatpush2.msra.mxu0 0.0
      %615 = vmatprep.subr.mxu0 0.0
      %616 = vmatpush2.msra.mxu0 0.0
      %617 = vmatprep.mubr.f32.mxu0 0.0
      %618 = vmatmul.mubr.f32.gmra.mxu0 %v551
      %v619 = vpop.f32.mrf.mxu0
      %v620 = vadd.f32 0.0, %v619
      %v621 = vpop.f32.mrf.mxu0
      %622 = vdwg.mxu0
      %v623 = vadd.f32 %v552, %v620
      %624 = vst [vmem:[#allocation2] sm:$0xff] %v623
      %p625 = scmp.eq.s32.totalorder %s15, 1
      // Predicated region
      $region41: #{energy_forces_forward.3} parent=35 // pred_check
        %p626 = pneg %p625
      $region42: #{energy_forces_forward.3} parent=35 // pred_check_branch
        %628 = sbr.rel (%p626) target = $region44
      $region43: #{energy_forces_forward.3} parent=35 // pred_region
        %v629 = vld [vmem:[#allocation2] sm:$0xff]
        %v630 = vld [vmem:[%s3] sm:$0x1]
        %v632 = vlaneseq
        %v633 = vshrl.u32 %v632, 7
        %v634 = vsub.s32 0, %v633
        %v635 = vrot.slane %v630, %v634
        %v637 = vmul.f32 %v629, %v635
        %638 = vadd.xlane.f32.xlu0 %v637
        %v639 = vpop.xlane.xlu0 %638
        %vm640 = vcmask 7168
        %641 = vst.msk [vmem:[%s4] sm:$0xff] %vm640, %v639
      $region44: #{energy_forces_forward.3} parent=35 // pred_fallthru
        _
      // Predicated region
      $region45: #{energy_forces_forward.3} parent=35 // pred_check
        %p642 = pneg %p122
      $region46: #{energy_forces_forward.3} parent=35 // pred_check_branch
        %644 = sbr.rel (%p642) target = $region48
      $region47: #{energy_forces_forward.3} parent=35 // pred_region
        _
      $region48: #{energy_forces_forward.3} parent=35 // pred_fallthru
        _
      // Predicated region
      $region49: #{energy_forces_forward.3} parent=35 // pred_check
        %p645 = pneg %p122
      $region50: #{energy_forces_forward.3} parent=35 // pred_check_branch
        %647 = sbr.rel (%p645) target = $region52
      $region51: #{energy_forces_forward.3} parent=35 // pred_region
        _
      $region52: #{energy_forces_forward.3} parent=35 // pred_fallthru
        _
    $region36: #{energy_forces_forward.3} parent=5 // pred_fallthru
      _
    %p648 = scmp.le.s32.totalorder 2, %s10
    // Predicated region
    $region53: #{energy_forces_forward.3} parent=5 // pred_check
      %p649 = pneg %p648
    $region54: #{energy_forces_forward.3} parent=5 // pred_check_branch
      %651 = sbr.rel (%p649) target = $region56
    $region55: #{energy_forces_forward.3} parent=5 // pred_region
      %s652 = ssub.s32 %s10, 2
    $region56: #{energy_forces_forward.3} parent=5 // pred_fallthru
      _
  $region6: #{energy_forces_forward.3} parent=0 // loop_footer
    %s14 = sadd.s32 1, %s10
  $region7: #{energy_forces_forward.3} parent=0 // loop_footer_branch
    %9 = sbr.rel target = $region3
  $region8: #{energy_forces_forward.3} parent=0 // loop_exit
    _

// kernel: energy_forces_forward.4
$region0: #{energy_forces_forward.4}
  #allocation0 [shape = 'u32[]', space=smem, size = 0x4, offset = 0x4, fixed_abs, tag = 'smem constant byte address 0x4 - core index']
  #allocation1 [shape = 'u32[144,128]{1,0:T(1,128)}', space=vmem, size = 0x12000, scoped, tag = 'internal scratch']
  #allocation2 [shape = 'f32[1,1]{1,0:T(1,128)S(6)}', space=smem, size = 0x200, scoped, tag = 'scoped memory for energy_forces_forward.4']
  %s0 = inlined_call_operand.vmem [shape: bf16[512,128], index: 0, kind: input, shape index: {}]
  %s1 = inlined_call_operand.vmem [shape: bf16[128,128], index: 1, kind: input, shape index: {}]
  %s2 = inlined_call_operand.vmem [shape: f32[1,128], index: 2, kind: input, shape index: {}]
  %s3 = inlined_call_operand.vmem [shape: f32[1,128], index: 3, kind: input, shape index: {}]
  %s4 = inlined_call_operand.<no memory space> [shape: f32[1,1], index: 4, kind: input, shape index: {}]
  %s5 = inlined_call_operand.vmem [shape: f32[512,128], index: 5, kind: input, shape index: {}]
  %s6 = inlined_call_operand.vmem [shape: bf16[512,128], index: 6, kind: output, shape index: {}]
  %s7 = sld [smem:[#allocation0]]
  $region57: #{energy_forces_forward.4} parent=0
    _
  %s9 = ssub.s32 1, %s7
  %s10 = scalar_select 0, %s9, %s7
  %11 = sst [smem:[#allocation2]] %s4
  loop: start=0, step=1, limit=6
  $region2: #{energy_forces_forward.4} parent=0 // loop_pre_header
    _
  $region3: #{energy_forces_forward.4} parent=0 // loop_header
    %s13 = sphi 0, %s17
    %p14 = scmp.ge.s32.totalorder %s13, 6
    %s23 = sphi 0, %s25
    %s26 = sphi 0, %s23
    %s27 = sphi 0, %s26
    %s43 = sphi 0, %s27
    %s47 = sphi 0, %s47
    %s49 = sphi 0, %s47
    %s50 = sphi 0, %s49
    %s64 = sphi 0, %s50
    %s68 = sphi 0, %s68
    %s70 = sphi 0, %s68
    %s71 = sphi 0, %s70
    %s85 = sphi 0, %s71
    %s89 = sphi 0, %s89
    %s91 = sphi 0, %s89
    %s92 = sphi 0, %s91
    %s106 = sphi 0, %s92
    %s110 = sphi 0, %s110
    %s112 = sphi 0, %s110
    %s113 = sphi 0, %s112
    %s127 = sphi 0, %s113
    %s133 = sphi 0, %s135
    %s136 = sphi 0, %s133
    %s137 = sphi 0, %s136
    %s153 = sphi 0, %s137
    %s159 = sphi 0, %s161
    %s162 = sphi 0, %s159
    %s163 = sphi 0, %s162
    %s179 = sphi 0, %s163
  $region4: #{energy_forces_forward.4} parent=0 // loop_header_branch
    %16 = sbr.rel (%p14) target = $region8
  $region5: #{energy_forces_forward.4} parent=0 // loop_body
    %s18 = ssub.s32 %s13, 1
    %s19 = ssub.s32 %s13, 2
    %s20 = sadd.s32 %s13, 1
    %s21 = ssub.s32 %s13, %s20
    %p22 = scmp.eq.s32.totalorder %s21, 0
    %s24 = sadd.s32 %s23, 1
    %s25 = scalar_select %p22, %s23, %s24
    %p28 = pneg %p22
    %p29 = scmp.eq.s32.totalorder %s13, 3
    %p30 = por %p28, %p29
    %p31 = scmp.ne.s32.totalorder %s23, %s26
    %p32 = scmp.eq.s32.totalorder %s13, 0
    %p33 = por %p31, %p32
    %p34 = scmp.ne.s32.totalorder %s23, %s26
    %p35 = scmp.eq.s32.totalorder %s18, 3
    %p36 = por %p34, %p35
    %p37 = scmp.ne.s32.totalorder %s26, %s27
    %p38 = scmp.eq.s32.totalorder %s18, 0
    %p39 = por %p37, %p38
    %p40 = scmp.ne.s32.totalorder %s26, %s27
    %p41 = scmp.eq.s32.totalorder %s19, 3
    %p42 = por %p40, %p41
    %p44 = scmp.ne.s32.totalorder %s27, %s43
    %p45 = scmp.eq.s32.totalorder %s19, 0
    %p46 = por %p44, %p45
    %s48 = sadd.s32 %s47, 1
    %p51 = scmp.eq.s32.totalorder %s13, 3
    %p52 = scmp.ne.s32.totalorder %s47, %s49
    %p53 = scmp.eq.s32.totalorder %s13, 0
    %p54 = por %p52, %p53
    %p55 = scmp.ne.s32.totalorder %s47, %s49
    %p56 = scmp.eq.s32.totalorder %s18, 3
    %p57 = por %p55, %p56
    %p58 = scmp.ne.s32.totalorder %s49, %s50
    %p59 = scmp.eq.s32.totalorder %s18, 0
    %p60 = por %p58, %p59
    %p61 = scmp.ne.s32.totalorder %s49, %s50
    %p62 = scmp.eq.s32.totalorder %s19, 3
    %p63 = por %p61, %p62
    %p65 = scmp.ne.s32.totalorder %s50, %s64
    %p66 = scmp.eq.s32.totalorder %s19, 0
    %p67 = por %p65, %p66
    %s69 = sadd.s32 %s68, 1
    %p72 = scmp.eq.s32.totalorder %s13, 3
    %p73 = scmp.ne.s32.totalorder %s68, %s70
    %p74 = scmp.eq.s32.totalorder %s13, 0
    %p75 = por %p73, %p74
    %p76 = scmp.ne.s32.totalorder %s68, %s70
    %p77 = scmp.eq.s32.totalorder %s18, 3
    %p78 = por %p76, %p77
    %p79 = scmp.ne.s32.totalorder %s70, %s71
    %p80 = scmp.eq.s32.totalorder %s18, 0
    %p81 = por %p79, %p80
    %p82 = scmp.ne.s32.totalorder %s70, %s71
    %p83 = scmp.eq.s32.totalorder %s19, 3
    %p84 = por %p82, %p83
    %p86 = scmp.ne.s32.totalorder %s71, %s85
    %p87 = scmp.eq.s32.totalorder %s19, 0
    %p88 = por %p86, %p87
    %s90 = sadd.s32 %s89, 1
    %p93 = scmp.eq.s32.totalorder %s13, 3
    %p94 = scmp.ne.s32.totalorder %s89, %s91
    %p95 = scmp.eq.s32.totalorder %s13, 0
    %p96 = por %p94, %p95
    %p97 = scmp.ne.s32.totalorder %s89, %s91
    %p98 = scmp.eq.s32.totalorder %s18, 3
    %p99 = por %p97, %p98
    %p100 = scmp.ne.s32.totalorder %s91, %s92
    %p101 = scmp.eq.s32.totalorder %s18, 0
    %p102 = por %p100, %p101
    %p103 = scmp.ne.s32.totalorder %s91, %s92
    %p104 = scmp.eq.s32.totalorder %s19, 3
    %p105 = por %p103, %p104
    %p107 = scmp.ne.s32.totalorder %s92, %s106
    %p108 = scmp.eq.s32.totalorder %s19, 0
    %p109 = por %p107, %p108
    %s111 = sadd.s32 %s110, 1
    %p114 = scmp.eq.s32.totalorder %s13, 3
    %p115 = scmp.ne.s32.totalorder %s110, %s112
    %p116 = scmp.eq.s32.totalorder %s13, 0
    %p117 = por %p115, %p116
    %p118 = scmp.ne.s32.totalorder %s110, %s112
    %p119 = scmp.eq.s32.totalorder %s18, 3
    %p120 = por %p118, %p119
    %p121 = scmp.ne.s32.totalorder %s112, %s113
    %p122 = scmp.eq.s32.totalorder %s18, 0
    %p123 = por %p121, %p122
    %p124 = scmp.ne.s32.totalorder %s112, %s113
    %p125 = scmp.eq.s32.totalorder %s19, 3
    %p126 = por %p124, %p125
    %p128 = scmp.ne.s32.totalorder %s113, %s127
    %p129 = scmp.eq.s32.totalorder %s19, 0
    %p130 = por %p128, %p129
    %s131 = ssub.s32 %s13, %s20
    %p132 = scmp.eq.s32.totalorder %s131, 0
    %s134 = sadd.s32 %s133, 1
    %s135 = scalar_select %p132, %s133, %s134
    %p138 = pneg %p132
    %p139 = scmp.eq.s32.totalorder %s13, 3
    %p140 = por %p138, %p139
    %p141 = scmp.ne.s32.totalorder %s133, %s136
    %p142 = scmp.eq.s32.totalorder %s13, 0
    %p143 = por %p141, %p142
    %p144 = scmp.ne.s32.totalorder %s133, %s136
    %p145 = scmp.eq.s32.totalorder %s18, 3
    %p146 = por %p144, %p145
    %p147 = scmp.ne.s32.totalorder %s136, %s137
    %p148 = scmp.eq.s32.totalorder %s18, 0
    %p149 = por %p147, %p148
    %p150 = scmp.ne.s32.totalorder %s136, %s137
    %p151 = scmp.eq.s32.totalorder %s19, 3
    %p152 = por %p150, %p151
    %p154 = scmp.ne.s32.totalorder %s137, %s153
    %p155 = scmp.eq.s32.totalorder %s19, 0
    %p156 = por %p154, %p155
    %s157 = ssub.s32 %s13, %s20
    %p158 = scmp.eq.s32.totalorder %s157, 0
    %s160 = sadd.s32 %s159, 1
    %s161 = scalar_select %p158, %s159, %s160
    %p164 = pneg %p158
    %p165 = scmp.eq.s32.totalorder %s13, 3
    %p166 = por %p164, %p165
    %p167 = scmp.ne.s32.totalorder %s159, %s162
    %p168 = scmp.eq.s32.totalorder %s13, 0
    %p169 = por %p167, %p168
    %p170 = scmp.ne.s32.totalorder %s159, %s162
    %p171 = scmp.eq.s32.totalorder %s18, 3
    %p172 = por %p170, %p171
    %p173 = scmp.ne.s32.totalorder %s162, %s163
    %p174 = scmp.eq.s32.totalorder %s18, 0
    %p175 = por %p173, %p174
    %p176 = scmp.ne.s32.totalorder %s162, %s163
    %p177 = scmp.eq.s32.totalorder %s19, 3
    %p178 = por %p176, %p177
    %p180 = scmp.ne.s32.totalorder %s163, %s179
    %p181 = scmp.eq.s32.totalorder %s19, 0
    %p182 = por %p180, %p181
    %p183 = scmp.le.s32.totalorder 1, %s13
    %p184 = scmp.lt.s32.totalorder %s13, 5
    %p185 = pnand %p183, %p184
    %p186 = pneg %p185
    // Predicated region
    $region9: #{energy_forces_forward.4} parent=5 // pred_check
      _
    $region10: #{energy_forces_forward.4} parent=5 // pred_check_branch
      %188 = sbr.rel (%p185) target = $region12
    $region11: #{energy_forces_forward.4} parent=5 // pred_region
      %s189 = ssub.s32 %s13, 1
      // Predicated region
      $region13: #{energy_forces_forward.4} parent=11 // pred_check
        %p190 = pneg %p60
      $region14: #{energy_forces_forward.4} parent=11 // pred_check_branch
        %192 = sbr.rel (%p190) target = $region16
      $region15: #{energy_forces_forward.4} parent=11 // pred_region
        _
      $region16: #{energy_forces_forward.4} parent=11 // pred_fallthru
        _
      // Predicated region
      $region17: #{energy_forces_forward.4} parent=11 // pred_check
        %p193 = pneg %p81
      $region18: #{energy_forces_forward.4} parent=11 // pred_check_branch
        %195 = sbr.rel (%p193) target = $region20
      $region19: #{energy_forces_forward.4} parent=11 // pred_region
        _
      $region20: #{energy_forces_forward.4} parent=11 // pred_fallthru
        _
      // Predicated region
      $region21: #{energy_forces_forward.4} parent=11 // pred_check
        %p196 = pneg %p102
      $region22: #{energy_forces_forward.4} parent=11 // pred_check_branch
        %198 = sbr.rel (%p196) target = $region24
      $region23: #{energy_forces_forward.4} parent=11 // pred_region
        _
      $region24: #{energy_forces_forward.4} parent=11 // pred_fallthru
        _
      // Predicated region
      $region25: #{energy_forces_forward.4} parent=11 // pred_check
        %p199 = pneg %p123
      $region26: #{energy_forces_forward.4} parent=11 // pred_check_branch
        %201 = sbr.rel (%p199) target = $region28
      $region27: #{energy_forces_forward.4} parent=11 // pred_region
        _
      $region28: #{energy_forces_forward.4} parent=11 // pred_fallthru
        _
    $region12: #{energy_forces_forward.4} parent=5 // pred_fallthru
      _
    %p202 = scmp.lt.s32.totalorder %s13, 4
    // Predicated region
    $region29: #{energy_forces_forward.4} parent=5 // pred_check
      %p203 = pneg %p202
    $region30: #{energy_forces_forward.4} parent=5 // pred_check_branch
      %205 = sbr.rel (%p203) target = $region32
    $region31: #{energy_forces_forward.4} parent=5 // pred_region
      // Predicated region
      $region33: #{energy_forces_forward.4} parent=31 // pred_check
        %p206 = pneg %p33
      $region34: #{energy_forces_forward.4} parent=31 // pred_check_branch
        %208 = sbr.rel (%p206) target = $region36
      $region35: #{energy_forces_forward.4} parent=31 // pred_region
        %s209 = smul.u32 16, %s13
        %p210 = scmp.lt.s32.totalorder %s209, 63
        %s211 = scalar_select %p210, %s209, 63
        %s212 = smul.addr %s211, 4
        %s213 = scalar_lea.vmem %s0, %s212
        %s214 = smul.u32 16, %s13
      $region36: #{energy_forces_forward.4} parent=31 // pred_fallthru
        _
      // Predicated region
      $region37: #{energy_forces_forward.4} parent=31 // pred_check
        %p215 = pneg %p143
      $region38: #{energy_forces_forward.4} parent=31 // pred_check_branch
        %217 = sbr.rel (%p215) target = $region40
      $region39: #{energy_forces_forward.4} parent=31 // pred_region
        %s218 = smul.u32 16, %s13
        %p219 = scmp.lt.s32.totalorder %s218, 63
        %s220 = scalar_select %p219, %s218, 63
        %s221 = smul.addr %s220, 8
        %s222 = scalar_lea.vmem %s5, %s221
        %s223 = smul.u32 16, %s13
      $region40: #{energy_forces_forward.4} parent=31 // pred_fallthru
        _
    $region32: #{energy_forces_forward.4} parent=5 // pred_fallthru
      _
    %p224 = scmp.le.s32.totalorder 1, %s13
    %p225 = scmp.lt.s32.totalorder %s13, 5
    %p226 = pnand %p224, %p225
    %p227 = pneg %p226
    // Predicated region
    $region41: #{energy_forces_forward.4} parent=5 // pred_check
      _
    $region42: #{energy_forces_forward.4} parent=5 // pred_check_branch
      %229 = sbr.rel (%p226) target = $region44
    $region43: #{energy_forces_forward.4} parent=5 // pred_region
      %s230 = ssub.s32 %s13, 1
      %s231 = smul.u32 16, %s18
      %p232 = scmp.lt.s32.totalorder %s231, 63
      %s233 = scalar_select %p232, %s231, 63
      %s234 = smul.addr %s233, 4
      %s235 = scalar_lea.vmem %s0, %s234
      %p236 = pneg %p39
      %p237 = pneg %p36
      %p238 = pneg %p60
      %p239 = pneg %p57
      %p240 = pneg %p81
      %p241 = pneg %p78
      %p242 = pneg %p102
      %p243 = pneg %p99
      %p244 = pneg %p123
      %p245 = pneg %p120
      %s246 = smul.u32 16, %s18
      %p247 = scmp.lt.s32.totalorder %s246, 63
      %s248 = scalar_select %p247, %s246, 63
      %s249 = smul.addr %s248, 8
      %s250 = scalar_lea.vmem %s5, %s249
      %p251 = pneg %p149
      %p252 = pneg %p146
      %p253 = pneg %p175
      %p254 = pneg %p172
      %s255 = smul.u32 16, %s18
      %p256 = scmp.lt.s32.totalorder %s255, 63
      %s257 = scalar_select %p256, %s255, 63
      %s258 = smul.addr %s257, 4
      %s259 = scalar_lea.vmem %s6, %s258
      %s260 = smul.u32 16, %s18
      %p261 = scmp.lt.s32.totalorder %s260, 63
      %s262 = scalar_select %p261, %s260, 63
      %s263 = smul.addr %s262, 4
      %s264 = scalar_lea.vmem %s0, %s263
      %s265 = smul.u32 16, %s18
      %s266 = smul.u32 16, %s18
      %p267 = scmp.lt.s32.totalorder %s266, 63
      %s268 = scalar_select %p267, %s266, 63
      %s269 = smul.addr %s268, 8
      %s270 = scalar_lea.vmem %s5, %s269
      %s271 = smul.u32 16, %s18
      %s272 = smul.u32 16, %s18
      %p273 = scmp.lt.s32.totalorder %s272, 63
      %s274 = scalar_select %p273, %s272, 63
      %s275 = smul.addr %s274, 4
      %s276 = scalar_lea.vmem %s6, %s275
      %s277 = smul.u32 16, %s18
      %v279 = vld [vmem:[%s264] sm:$0xf]
      %v280 = vld [vmem:[%s264 + $0x4] sm:$0xf]
      %v281 = vld [vmem:[%s264 + $0x8] sm:$0xf]
      %v282 = vld [vmem:[%s264 + $0xc] sm:$0xf]
      %v283 = vld [vmem:[%s264 + $0x10] sm:$0xf]
      %v284 = vld [vmem:[%s264 + $0x14] sm:$0xf]
      %v285 = vld [vmem:[%s264 + $0x18] sm:$0xf]
      %v286 = vld [vmem:[%s264 + $0x1c] sm:$0xf]
      %v287 = vld [vmem:[%s264 + $0x20] sm:$0xf]
      %v288 = vld [vmem:[%s264 + $0x24] sm:$0xf]
      %v289 = vld [vmem:[%s264 + $0x28] sm:$0xf]
      %v290 = vld [vmem:[%s264 + $0x2c] sm:$0xf]
      %v291 = vld [vmem:[%s264 + $0x30] sm:$0xf]
      %v292 = vld [vmem:[%s264 + $0x34] sm:$0xf]
      %v293 = vld [vmem:[%s264 + $0x38] sm:$0xf]
      %v294 = vld [vmem:[%s264 + $0x3c] sm:$0xf]
      %v295 = vld [vmem:[%s1] sm:$0xf]
      %v296 = vld [vmem:[%s1 + $0x4] sm:$0xf]
      %v297 = vld [vmem:[%s1 + $0x8] sm:$0xf]
      %v298 = vld [vmem:[%s1 + $0xc] sm:$0xf]
      %v299 = vld [vmem:[%s1 + $0x10] sm:$0xf]
      %v300 = vld [vmem:[%s1 + $0x14] sm:$0xf]
      %v301 = vld [vmem:[%s1 + $0x18] sm:$0xf]
      %v302 = vld [vmem:[%s1 + $0x1c] sm:$0xf]
      %v303 = vld [vmem:[%s1 + $0x20] sm:$0xf]
      %v304 = vld [vmem:[%s1 + $0x24] sm:$0xf]
      %v305 = vld [vmem:[%s1 + $0x28] sm:$0xf]
      %v306 = vld [vmem:[%s1 + $0x2c] sm:$0xf]
      %v307 = vld [vmem:[%s1 + $0x30] sm:$0xf]
      %v308 = vld [vmem:[%s1 + $0x34] sm:$0xf]
      %v309 = vld [vmem:[%s1 + $0x38] sm:$0xf]
      %v310 = vld [vmem:[%s1 + $0x3c] sm:$0xf]
      %v311 = vld [vmem:[%s2] sm:$0x1]
      %v313 = vlaneseq
      %v314 = vshrl.u32 %v313, 7
      %v315 = vsub.s32 0, %v314
      %v316 = vrot.slane %v311, %v315
      %v334 = vunpack.c.l.b16 %v279
      %v335 = vunpack.c.l.b16 %v280
      %v336 = vunpack.c.l.b16 %v281
      %v337 = vunpack.c.l.b16 %v282
      %v338 = vunpack.c.l.b16 %v283
      %v339 = vunpack.c.l.b16 %v284
      %v340 = vunpack.c.l.b16 %v285
      %v341 = vunpack.c.l.b16 %v286
      %v342 = vunpack.c.l.b16 %v287
      %v343 = vunpack.c.l.b16 %v288
      %v344 = vunpack.c.l.b16 %v289
      %v345 = vunpack.c.l.b16 %v290
      %v346 = vunpack.c.l.b16 %v291
      %v347 = vunpack.c.l.b16 %v292
      %v348 = vunpack.c.l.b16 %v293
      %v349 = vunpack.c.l.b16 %v294
      %v350 = vpack.c.b16 %v335, %v334
      %v351 = vpack.c.b16 %v337, %v336
      %v352 = vpack.c.b16 %v339, %v338
      %v353 = vpack.c.b16 %v341, %v340
      %v354 = vpack.c.b16 %v343, %v342
      %v355 = vpack.c.b16 %v345, %v344
      %v356 = vpack.c.b16 %v347, %v346
      %v357 = vpack.c.b16 %v349, %v348
      %v382 = vunpack.c.l.b16 %v295
      %v383 = vunpack.c.l.b16 %v296
      %v384 = vunpack.c.l.b16 %v297
      %v385 = vunpack.c.l.b16 %v298
      %v386 = vunpack.c.l.b16 %v299
      %v387 = vunpack.c.l.b16 %v300
      %v388 = vunpack.c.l.b16 %v301
      %v389 = vunpack.c.l.b16 %v302
      %v390 = vunpack.c.l.b16 %v303
      %v391 = vunpack.c.l.b16 %v304
      %v392 = vunpack.c.l.b16 %v305
      %v393 = vunpack.c.l.b16 %v306
      %v394 = vunpack.c.l.b16 %v307
      %v395 = vunpack.c.l.b16 %v308
      %v396 = vunpack.c.l.b16 %v309
      %v397 = vunpack.c.l.b16 %v310
      %v398 = vpack.c.b16 %v383, %v382
      %v399 = vpack.c.b16 %v385, %v384
      %v400 = vpack.c.b16 %v387, %v386
      %v401 = vpack.c.b16 %v389, %v388
      %v402 = vpack.c.b16 %v391, %v390
      %v403 = vpack.c.b16 %v393, %v392
      %v404 = vpack.c.b16 %v395, %v394
      %v405 = vpack.c.b16 %v397, %v396
      %414 = vmatprep.subr.bf16.mxu0 0
      %415 = vmatpush1.bf16.msra.mxu0 %v405
      %416 = vmatprep.subr.bf16.mxu0 0
      %417 = vmatpush1.bf16.msra.mxu0 %v404
      %418 = vmatprep.subr.bf16.mxu0 0
      %419 = vmatpush1.bf16.msra.mxu0 %v403
      %420 = vmatprep.subr.bf16.mxu0 0
      %421 = vmatpush1.bf16.msra.mxu0 %v402
      %422 = vmatprep.subr.bf16.mxu0 0
      %423 = vmatpush1.bf16.msra.mxu0 %v401
      %424 = vmatprep.subr.bf16.mxu0 0
      %425 = vmatpush1.bf16.msra.mxu0 %v400
      %426 = vmatprep.subr.bf16.mxu0 0
      %427 = vmatpush1.bf16.msra.mxu0 %v399
      %428 = vmatprep.subr.bf16.mxu0 0
      %429 = vmatpush1.bf16.msra.mxu0 %v398
      %430 = vmatprep.subr.bf16.mxu0 0
      %431 = vmatpush2.bf16.msra.mxu0 0
      %432 = vmatprep.subr.bf16.mxu0 0
      %433 = vmatpush2.bf16.msra.mxu0 0
      %434 = vmatprep.subr.bf16.mxu0 0
      %435 = vmatpush2.bf16.msra.mxu0 0
      %436 = vmatprep.subr.bf16.mxu0 0
      %437 = vmatpush2.bf16.msra.mxu0 0
      %438 = vmatprep.subr.bf16.mxu0 0
      %439 = vmatpush2.bf16.msra.mxu0 0
      %440 = vmatprep.subr.bf16.mxu0 0
      %441 = vmatpush2.bf16.msra.mxu0 0
      %442 = vmatprep.subr.bf16.mxu0 0
      %443 = vmatpush2.bf16.msra.mxu0 0
      %444 = vmatprep.subr.bf16.mxu0 0
      %445 = vmatpush2.bf16.msra.mxu0 0
      %446 = vmatprep.mubr.bf16.mxu0 0
      %447 = vmatmul.mubr.bf16.gmra.mxu0 %v350
      %v448 = vpop.f32.mrf.mxu0
      %v449 = vadd.f32 %v316, %v448
      %v450 = vpop.f32.mrf.mxu0
      %v451 = vpop.f32.mrf.mxu0
      %v452 = vadd.f32 %v316, %v451
      %v453 = vpop.f32.mrf.mxu0
      %454 = vmatprep.mubr.bf16.mxu0 0
      %455 = vmatmul.mubr.bf16.gmra.mxu0 %v351
      %v456 = vpop.f32.mrf.mxu0
      %v457 = vadd.f32 %v316, %v456
      %v458 = vpop.f32.mrf.mxu0
      %v459 = vpop.f32.mrf.mxu0
      %v460 = vadd.f32 %v316, %v459
      %v461 = vpop.f32.mrf.mxu0
      %462 = vmatprep.mubr.bf16.mxu0 0
      %463 = vmatmul.mubr.bf16.gmra.mxu0 %v352
      %v464 = vpop.f32.mrf.mxu0
      %v465 = vadd.f32 %v316, %v464
      %v466 = vpop.f32.mrf.mxu0
      %v467 = vpop.f32.mrf.mxu0
      %v468 = vadd.f32 %v316, %v467
      %v469 = vpop.f32.mrf.mxu0
      %470 = vmatprep.mubr.bf16.mxu0 0
      %471 = vmatmul.mubr.bf16.gmra.mxu0 %v353
      %v472 = vpop.f32.mrf.mxu0
      %v473 = vadd.f32 %v316, %v472
      %v474 = vpop.f32.mrf.mxu0
      %v475 = vpop.f32.mrf.mxu0
      %v476 = vadd.f32 %v316, %v475
      %v477 = vpop.f32.mrf.mxu0
      %478 = vmatprep.mubr.bf16.mxu0 0
      %479 = vmatmul.mubr.bf16.gmra.mxu0 %v354
      %v480 = vpop.f32.mrf.mxu0
      %v481 = vadd.f32 %v316, %v480
      %v482 = vpop.f32.mrf.mxu0
      %v483 = vpop.f32.mrf.mxu0
      %v484 = vadd.f32 %v316, %v483
      %v485 = vpop.f32.mrf.mxu0
      %486 = vmatprep.mubr.bf16.mxu0 0
      %487 = vmatmul.mubr.bf16.gmra.mxu0 %v355
      %v488 = vpop.f32.mrf.mxu0
      %v489 = vadd.f32 %v316, %v488
      %v490 = vpop.f32.mrf.mxu0
      %v491 = vpop.f32.mrf.mxu0
      %v492 = vadd.f32 %v316, %v491
      %v493 = vpop.f32.mrf.mxu0
      %494 = vmatprep.mubr.bf16.mxu0 0
      %495 = vmatmul.mubr.bf16.gmra.mxu0 %v356
      %v496 = vpop.f32.mrf.mxu0
      %v497 = vadd.f32 %v316, %v496
      %v498 = vpop.f32.mrf.mxu0
      %v499 = vpop.f32.mrf.mxu0
      %v500 = vadd.f32 %v316, %v499
      %v501 = vpop.f32.mrf.mxu0
      %502 = vmatprep.mubr.bf16.mxu0 0
      %503 = vmatmul.mubr.bf16.gmra.mxu0 %v357
      %v504 = vpop.f32.mrf.mxu0
      %v505 = vadd.f32 %v316, %v504
      %v506 = vpop.f32.mrf.mxu0
      %v507 = vpop.f32.mrf.mxu0
      %v508 = vadd.f32 %v316, %v507
      %v509 = vpop.f32.mrf.mxu0
      %510 = vdwg.mxu0
      %v511 = vxor.u32 %v449, 2147483648
      %v512 = vxor.u32 %v452, 2147483648
      %v513 = vxor.u32 %v457, 2147483648
      %v514 = vxor.u32 %v460, 2147483648
      %v515 = vxor.u32 %v465, 2147483648
      %v516 = vxor.u32 %v468, 2147483648
      %v517 = vxor.u32 %v473, 2147483648
      %v518 = vxor.u32 %v476, 2147483648
      %v519 = vxor.u32 %v481, 2147483648
      %v520 = vxor.u32 %v484, 2147483648
      %v521 = vxor.u32 %v489, 2147483648
      %v522 = vxor.u32 %v492, 2147483648
      %v523 = vxor.u32 %v497, 2147483648
      %v524 = vxor.u32 %v500, 2147483648
      %v525 = vxor.u32 %v505, 2147483648
      %v526 = vxor.u32 %v508, 2147483648
      %v527 = vmul.f32 %v511, 1.442695
      %v528 = vpow.pop %v527
      %v529 = vmul.f32 %v512, 1.442695
      %v530 = vpow.pop %v529
      %v531 = vmul.f32 %v513, 1.442695
      %v532 = vpow.pop %v531
      %v533 = vmul.f32 %v514, 1.442695
      %v534 = vpow.pop %v533
      %v535 = vmul.f32 %v515, 1.442695
      %v536 = vpow.pop %v535
      %v537 = vmul.f32 %v516, 1.442695
      %v538 = vpow.pop %v537
      %v539 = vmul.f32 %v517, 1.442695
      %v540 = vpow.pop %v539
      %v541 = vmul.f32 %v518, 1.442695
      %v542 = vpow.pop %v541
      %v543 = vmul.f32 %v519, 1.442695
      %v544 = vpow.pop %v543
      %v545 = vmul.f32 %v520, 1.442695
      %v546 = vpow.pop %v545
      %v547 = vmul.f32 %v521, 1.442695
      %v548 = vpow.pop %v547
      %v549 = vmul.f32 %v522, 1.442695
      %v550 = vpow.pop %v549
      %v551 = vmul.f32 %v523, 1.442695
      %v552 = vpow.pop %v551
      %v553 = vmul.f32 %v524, 1.442695
      %v554 = vpow.pop %v553
      %v555 = vmul.f32 %v525, 1.442695
      %v556 = vpow.pop %v555
      %v557 = vmul.f32 %v526, 1.442695
      %v558 = vpow.pop %v557
      %v559 = vadd.f32 %v528, 1.0
      %v560 = vadd.f32 %v530, 1.0
      %v561 = vadd.f32 %v532, 1.0
      %v562 = vadd.f32 %v534, 1.0
      %v563 = vadd.f32 %v536, 1.0
      %v564 = vadd.f32 %v538, 1.0
      %v565 = vadd.f32 %v540, 1.0
      %v566 = vadd.f32 %v542, 1.0
      %v567 = vadd.f32 %v544, 1.0
      %v568 = vadd.f32 %v546, 1.0
      %v569 = vadd.f32 %v548, 1.0
      %v570 = vadd.f32 %v550, 1.0
      %v571 = vadd.f32 %v552, 1.0
      %v572 = vadd.f32 %v554, 1.0
      %v573 = vadd.f32 %v556, 1.0
      %v574 = vadd.f32 %v558, 1.0
      %v575 = vrcp.pop %v559
      %v576 = vmul.f32 1.0, %v575
      %v577 = vrcp.pop %v560
      %v578 = vmul.f32 1.0, %v577
      %v579 = vrcp.pop %v561
      %v580 = vmul.f32 1.0, %v579
      %v581 = vrcp.pop %v562
      %v582 = vmul.f32 1.0, %v581
      %v583 = vrcp.pop %v563
      %v584 = vmul.f32 1.0, %v583
      %v585 = vrcp.pop %v564
      %v586 = vmul.f32 1.0, %v585
      %v587 = vrcp.pop %v565
      %v588 = vmul.f32 1.0, %v587
      %v589 = vrcp.pop %v566
      %v590 = vmul.f32 1.0, %v589
      %v591 = vrcp.pop %v567
      %v592 = vmul.f32 1.0, %v591
      %v593 = vrcp.pop %v568
      %v594 = vmul.f32 1.0, %v593
      %v595 = vrcp.pop %v569
      %v596 = vmul.f32 1.0, %v595
      %v597 = vrcp.pop %v570
      %v598 = vmul.f32 1.0, %v597
      %v599 = vrcp.pop %v571
      %v600 = vmul.f32 1.0, %v599
      %v601 = vrcp.pop %v572
      %v602 = vmul.f32 1.0, %v601
      %v603 = vrcp.pop %v573
      %v604 = vmul.f32 1.0, %v603
      %v605 = vrcp.pop %v574
      %v606 = vmul.f32 1.0, %v605
      %v607 = vmul.f32 %v449, %v576
      %v608 = vmul.f32 %v452, %v578
      %v609 = vmul.f32 %v457, %v580
      %v610 = vmul.f32 %v460, %v582
      %v611 = vmul.f32 %v465, %v584
      %v612 = vmul.f32 %v468, %v586
      %v613 = vmul.f32 %v473, %v588
      %v614 = vmul.f32 %v476, %v590
      %v615 = vmul.f32 %v481, %v592
      %v616 = vmul.f32 %v484, %v594
      %v617 = vmul.f32 %v489, %v596
      %v618 = vmul.f32 %v492, %v598
      %v619 = vmul.f32 %v497, %v600
      %v620 = vmul.f32 %v500, %v602
      %v621 = vmul.f32 %v505, %v604
      %v622 = vmul.f32 %v508, %v606
      %v623 = vld [vmem:[%s3] sm:$0x1]
      %v625 = vlaneseq
      %v626 = vshrl.u32 %v625, 7
      %v627 = vsub.s32 0, %v626
      %v628 = vrot.slane %v623, %v627
      %v630 = vmul.f32 %v607, %v628
      %v631 = vmul.f32 %v608, %v628
      %v632 = vmul.f32 %v609, %v628
      %v633 = vmul.f32 %v610, %v628
      %v634 = vmul.f32 %v611, %v628
      %v635 = vmul.f32 %v612, %v628
      %v636 = vmul.f32 %v613, %v628
      %v637 = vmul.f32 %v614, %v628
      %v638 = vmul.f32 %v615, %v628
      %v639 = vmul.f32 %v616, %v628
      %v640 = vmul.f32 %v617, %v628
      %v641 = vmul.f32 %v618, %v628
      %v642 = vmul.f32 %v619, %v628
      %v643 = vmul.f32 %v620, %v628
      %v644 = vmul.f32 %v621, %v628
      %v645 = vmul.f32 %v622, %v628
      %646 = vadd.xlane.f32.xlu0 %v630
      %v647 = vpop.xlane.xlu0 %646
      %648 = vadd.xlane.f32.xlu0 %v631
      %v649 = vpop.xlane.xlu0 %648
      %650 = vadd.xlane.f32.xlu0 %v632
      %v651 = vpop.xlane.xlu0 %650
      %652 = vadd.xlane.f32.xlu0 %v633
      %v653 = vpop.xlane.xlu0 %652
      %654 = vadd.xlane.f32.xlu0 %v634
      %v655 = vpop.xlane.xlu0 %654
      %656 = vadd.xlane.f32.xlu0 %v635
      %v657 = vpop.xlane.xlu0 %656
      %658 = vadd.xlane.f32.xlu0 %v636
      %v659 = vpop.xlane.xlu0 %658
      %660 = vadd.xlane.f32.xlu0 %v637
      %v661 = vpop.xlane.xlu0 %660
      %662 = vadd.xlane.f32.xlu0 %v638
      %v663 = vpop.xlane.xlu0 %662
      %664 = vadd.xlane.f32.xlu0 %v639
      %v665 = vpop.xlane.xlu0 %664
      %666 = vadd.xlane.f32.xlu0 %v640
      %v667 = vpop.xlane.xlu0 %666
      %668 = vadd.xlane.f32.xlu0 %v641
      %v669 = vpop.xlane.xlu0 %668
      %670 = vadd.xlane.f32.xlu0 %v642
      %v671 = vpop.xlane.xlu0 %670
      %672 = vadd.xlane.f32.xlu0 %v643
      %v673 = vpop.xlane.xlu0 %672
      %674 = vadd.xlane.f32.xlu0 %v644
      %v675 = vpop.xlane.xlu0 %674
      %676 = vadd.xlane.f32.xlu0 %v645
      %v677 = vpop.xlane.xlu0 %676
      %s678 = sld [smem:[#allocation2]]
      %v679 = vstv %s678
      %v680 = vadd.f32 %v647, %v679
      %v681 = vadd.f32 %v649, %v679
      %v682 = vadd.f32 %v651, %v679
      %v683 = vadd.f32 %v653, %v679
      %v684 = vadd.f32 %v655, %v679
      %v685 = vadd.f32 %v657, %v679
      %v686 = vadd.f32 %v659, %v679
      %v687 = vadd.f32 %v661, %v679
      %v688 = vadd.f32 %v663, %v679
      %v689 = vadd.f32 %v665, %v679
      %v690 = vadd.f32 %v667, %v679
      %v691 = vadd.f32 %v669, %v679
      %v692 = vadd.f32 %v671, %v679
      %v693 = vadd.f32 %v673, %v679
      %v694 = vadd.f32 %v675, %v679
      %v695 = vadd.f32 %v677, %v679
      %v696 = vld [vmem:[%s270] sm:$0xff]
      %v697 = vld [vmem:[%s270 + $0x8] sm:$0xff]
      %v698 = vld [vmem:[%s270 + $0x10] sm:$0xff]
      %v699 = vld [vmem:[%s270 + $0x18] sm:$0xff]
      %v700 = vld [vmem:[%s270 + $0x20] sm:$0xff]
      %v701 = vld [vmem:[%s270 + $0x28] sm:$0xff]
      %v702 = vld [vmem:[%s270 + $0x30] sm:$0xff]
      %v703 = vld [vmem:[%s270 + $0x38] sm:$0xff]
      %v704 = vld [vmem:[%s270 + $0x40] sm:$0xff]
      %v705 = vld [vmem:[%s270 + $0x48] sm:$0xff]
      %v706 = vld [vmem:[%s270 + $0x50] sm:$0xff]
      %v707 = vld [vmem:[%s270 + $0x58] sm:$0xff]
      %v708 = vld [vmem:[%s270 + $0x60] sm:$0xff]
      %v709 = vld [vmem:[%s270 + $0x68] sm:$0xff]
      %v710 = vld [vmem:[%s270 + $0x70] sm:$0xff]
      %v711 = vld [vmem:[%s270 + $0x78] sm:$0xff]
      %v712 = vmul.f32 %v680, %v696
      %v713 = vmul.f32 %v681, %v697
      %v714 = vmul.f32 %v682, %v698
      %v715 = vmul.f32 %v683, %v699
      %v716 = vmul.f32 %v684, %v700
      %v717 = vmul.f32 %v685, %v701
      %v718 = vmul.f32 %v686, %v702
      %v719 = vmul.f32 %v687, %v703
      %v720 = vmul.f32 %v688, %v704
      %v721 = vmul.f32 %v689, %v705
      %v722 = vmul.f32 %v690, %v706
      %v723 = vmul.f32 %v691, %v707
      %v724 = vmul.f32 %v692, %v708
      %v725 = vmul.f32 %v693, %v709
      %v726 = vmul.f32 %v694, %v710
      %v727 = vmul.f32 %v695, %v711
      %v728 = vpack.c.bf16 %v713, %v712
      %v729 = vpack.c.bf16 %v715, %v714
      %v730 = vpack.c.bf16 %v717, %v716
      %v731 = vpack.c.bf16 %v719, %v718
      %v732 = vpack.c.bf16 %v721, %v720
      %v733 = vpack.c.bf16 %v723, %v722
      %v734 = vpack.c.bf16 %v725, %v724
      %v735 = vpack.c.bf16 %v727, %v726
      %v744 = vunpack.c.l.b16 %v728
      %v745 = vunpack.c.h.b16 %v728
      %v746 = vunpack.c.l.b16 %v729
      %v747 = vunpack.c.h.b16 %v729
      %v748 = vunpack.c.l.b16 %v730
      %v749 = vunpack.c.h.b16 %v730
      %v750 = vunpack.c.l.b16 %v731
      %v751 = vunpack.c.h.b16 %v731
      %v752 = vunpack.c.l.b16 %v732
      %v753 = vunpack.c.h.b16 %v732
      %v754 = vunpack.c.l.b16 %v733
      %v755 = vunpack.c.h.b16 %v733
      %v756 = vunpack.c.l.b16 %v734
      %v757 = vunpack.c.h.b16 %v734
      %v758 = vunpack.c.l.b16 %v735
      %v759 = vunpack.c.h.b16 %v735
      %v760 = vpack.c.b16 %v744, %v744
      %v761 = vpack.c.b16 %v745, %v745
      %v762 = vpack.c.b16 %v746, %v746
      %v763 = vpack.c.b16 %v747, %v747
      %v764 = vpack.c.b16 %v748, %v748
      %v765 = vpack.c.b16 %v749, %v749
      %v766 = vpack.c.b16 %v750, %v750
      %v767 = vpack.c.b16 %v751, %v751
      %v768 = vpack.c.b16 %v752, %v752
      %v769 = vpack.c.b16 %v753, %v753
      %v770 = vpack.c.b16 %v754, %v754
      %v771 = vpack.c.b16 %v755, %v755
      %v772 = vpack.c.b16 %v756, %v756
      %v773 = vpack.c.b16 %v757, %v757
      %v774 = vpack.c.b16 %v758, %v758
      %v775 = vpack.c.b16 %v759, %v759
      %792 = vst [vmem:[%s276] sm:$0xf] %v760
      %793 = vst [vmem:[%s276 + $0x4] sm:$0xf] %v761
      %794 = vst [vmem:[%s276 + $0x8] sm:$0xf] %v762
      %795 = vst [vmem:[%s276 + $0xc] sm:$0xf] %v763
      %796 = vst [vmem:[%s276 + $0x10] sm:$0xf] %v764
      %797 = vst [vmem:[%s276 + $0x14] sm:$0xf] %v765
      %798 = vst [vmem:[%s276 + $0x18] sm:$0xf] %v766
      %799 = vst [vmem:[%s276 + $0x1c] sm:$0xf] %v767
      %800 = vst [vmem:[%s276 + $0x20] sm:$0xf] %v768
      %801 = vst [vmem:[%s276 + $0x24] sm:$0xf] %v769
      %802 = vst [vmem:[%s276 + $0x28] sm:$0xf] %v770
      %803 = vst [vmem:[%s276 + $0x2c] sm:$0xf] %v771
      %804 = vst [vmem:[%s276 + $0x30] sm:$0xf] %v772
      %805 = vst [vmem:[%s276 + $0x34] sm:$0xf] %v773
      %806 = vst [vmem:[%s276 + $0x38] sm:$0xf] %v774
      %807 = vst [vmem:[%s276 + $0x3c] sm:$0xf] %v775
      %s808 = smul.u32 16, %s18
      %p809 = scmp.lt.s32.totalorder %s808, 63
      %s810 = scalar_select %p809, %s808, 63
      %s811 = smul.addr %s810, 4
      %s812 = scalar_lea.vmem %s6, %s811
      // Predicated region
      $region45: #{energy_forces_forward.4} parent=43 // pred_check
        %p813 = pneg %p172
      $region46: #{energy_forces_forward.4} parent=43 // pred_check_branch
        %815 = sbr.rel (%p813) target = $region48
      $region47: #{energy_forces_forward.4} parent=43 // pred_region
        %s816 = smul.u32 16, %s18
      $region48: #{energy_forces_forward.4} parent=43 // pred_fallthru
        _
    $region44: #{energy_forces_forward.4} parent=5 // pred_fallthru
      _
    %p817 = scmp.le.s32.totalorder 2, %s13
    // Predicated region
    $region49: #{energy_forces_forward.4} parent=5 // pred_check
      %p818 = pneg %p817
    $region50: #{energy_forces_forward.4} parent=5 // pred_check_branch
      %820 = sbr.rel (%p818) target = $region52
    $region51: #{energy_forces_forward.4} parent=5 // pred_region
      %s821 = ssub.s32 %s13, 2
      // Predicated region
      $region53: #{energy_forces_forward.4} parent=51 // pred_check
        %p822 = pneg %p178
      $region54: #{energy_forces_forward.4} parent=51 // pred_check_branch
        %824 = sbr.rel (%p822) target = $region56
      $region55: #{energy_forces_forward.4} parent=51 // pred_region
        %s825 = smul.u32 16, %s19
        %p826 = scmp.lt.s32.totalorder %s825, 63
        %s827 = scalar_select %p826, %s825, 63
        %s828 = smul.addr %s827, 4
        %s829 = scalar_lea.vmem %s6, %s828
      $region56: #{energy_forces_forward.4} parent=51 // pred_fallthru
        _
    $region52: #{energy_forces_forward.4} parent=5 // pred_fallthru
      _
  $region6: #{energy_forces_forward.4} parent=0 // loop_footer
    %s17 = sadd.s32 1, %s13
  $region7: #{energy_forces_forward.4} parent=0 // loop_footer_branch
    %12 = sbr.rel target = $region3
  $region8: #{energy_forces_forward.4} parent=0 // loop_exit
    _

</llo_original>
